<compile_context>
chip_gen: v7x
topology: tpu7x:2x2x1
jax: 0.10.0
libtpu: 0.0.40
codegen_flags: <defaults>
</compile_context>

<pallas_src>
import jax
import jax.numpy as jnp
from jax.experimental import pallas as pl
from jax.experimental.pallas import tpu as pltpu

EPS = 1e-5


def _conv_bn_relu_kernel(x_ref, w_ref, b_ref, o_ref):
    """x_ref: (N, H, W, Cin)   NHWC input (unpadded), VMEM
       w_ref: (Cout, 9*Cin)    weights, column = (dy, dx, ci)
       b_ref: (Cout, 1)        conv bias
       o_ref: (Cout, N*H*W)    conv->BN->ReLU output, lane-dense (N*H*W % 128 == 0)
    """
    N, H, W, Cin = x_ref.shape
    Cout = o_ref.shape[0]
    P = N * H * W

    x = x_ref[...].astype(jnp.float32)
    w = w_ref[...].astype(jnp.float32)
    b = b_ref[...].astype(jnp.float32)

    # --- zero-pad H/W by 1 inside the kernel (no extra HBM pass) -------------
    zw = jnp.zeros((N, H, 1, Cin), jnp.float32)
    xp = jnp.concatenate([zw, x, zw], axis=2)               # (N, H, W+2, Cin)
    zh = jnp.zeros((N, 1, W + 2, Cin), jnp.float32)
    xp = jnp.concatenate([zh, xp, zh], axis=1)               # (N, H+2, W+2, Cin)

    # --- im2col: 9 shifted windows stacked along the channel (lane) axis -----
    taps = [xp[:, dy:dy + H, dx:dx + W, :]
            for dy in range(3) for dx in range(3)]           # 9 x (N, H, W, Cin)
    cols = jnp.concatenate(taps, axis=-1)                    # (N, H, W, 9*Cin)
    cols = cols.reshape(P, 9 * Cin)                          # minor dim preserved

    # --- convolution as a single MXU contraction, K = 9*Cin ------------------
    # (Cout, 9*Cin) . (P, 9*Cin)^T -> (Cout, P); P = 512 lanes => dense output
    acc = jax.lax.dot_general(
        w, cols, dimension_numbers=(((1,), (1,)), ((), ())),
        preferred_element_type=jnp.float32)                  # (Cout, P)
    acc = acc + b                                            # bias, fused epilogue

    # --- pseudo batch norm: single pass (sum & sumsq), per output channel ----
    inv_cnt = 1.0 / P
    s = jnp.sum(acc, axis=1, keepdims=True)                  # (Cout, 1)
    ss = jnp.sum(acc * acc, axis=1, keepdims=True)           # (Cout, 1)
    mean = s * inv_cnt
    var = ss * inv_cnt - mean * mean
    y = (acc - mean) * jax.lax.rsqrt(var + EPS)

    # --- ReLU + lane-dense store ---------------------------------------------
    o_ref[...] = jnp.maximum(y, 0.0).astype(o_ref.dtype)


def conv3x3_bn_relu(x_nchw, weight, bias):
    """x_nchw: (N, Cin, H, W) float32 (PyTorch layout)
       weight: (Cout, Cin, 3, 3) float32 (PyTorch Conv2d layout)
       bias:   (Cout,) float32
       returns (N, Cout, H, W) float32
    """
    N, Cin, H, W = x_nchw.shape
    Cout = weight.shape[0]
    P = N * H * W

    # glue (plain XLA, tiny): channels-last for lane-axis channels, weight flatten
    x_nhwc = jnp.transpose(x_nchw, (0, 2, 3, 1))                       # (N,H,W,Cin)
    # (Cout, Cin, 3, 3) -> (Cout, 3, 3, Cin) -> (Cout, 9*Cin), col = (dy, dx, ci)
    w2 = jnp.transpose(weight, (0, 2, 3, 1)).reshape(Cout, 9 * Cin)
    b2 = bias.reshape(Cout, 1)

    out = pl.pallas_call(
        _conv_bn_relu_kernel,
        out_shape=jax.ShapeDtypeStruct((Cout, P), jnp.float32),
        grid=(1,),
        in_specs=[
            pl.BlockSpec((N, H, W, Cin), lambda i: (0, 0, 0, 0)),
            pl.BlockSpec((Cout, 9 * Cin), lambda i: (0, 0)),
            pl.BlockSpec((Cout, 1), lambda i: (0, 0)),
        ],
        out_specs=pl.BlockSpec((Cout, P), lambda i: (0, 0)),
        compiler_params=pltpu.CompilerParams(
            dimension_semantics=("arbitrary",)),
    )(x_nhwc, w2, b2)

    # columns are (n, h, w) row-major -> reshape + transpose back to NCHW
    return jnp.transpose(out.reshape(Cout, N, H, W), (1, 0, 2, 3))


def _reference(x_nchw, weight, bias):
    """Pure-jnp reference (same math, no Pallas) for a sanity check."""
    N, Cin, H, W = x_nchw.shape
    Cout = weight.shape[0]
    x = jnp.transpose(x_nchw, (0, 2, 3, 1))
    xp = jnp.pad(x, ((0, 0), (1, 1), (1, 1), (0, 0)))
    w = jnp.transpose(weight, (2, 3, 1, 0))                            # (3,3,Cin,Cout)
    acc = jnp.zeros((N, H, W, Cout), jnp.float32)
    for dy in range(3):
        for dx in range(3):
            patch = xp[:, dy:dy + H, dx:dx + W, :]
            acc = acc + jnp.einsum("nhwc,co->nhwo", patch, w[dy, dx])
    acc = acc + bias
    m = jnp.mean(acc, axis=(0, 1, 2), keepdims=True)
    v = jnp.mean((acc - m) ** 2, axis=(0, 1, 2), keepdims=True)
    y = jnp.maximum((acc - m) * jax.lax.rsqrt(v + EPS), 0.0)
    return jnp.transpose(y, (0, 3, 1, 2))


if __name__ == "__main__":
    # small shapes consistent with the module: NCHW input, Cin=4 -> Cout=8
    N, Cin, Cout, H, W = 2, 4, 8, 16, 16

    key = jax.random.PRNGKey(0)
    kx, kw, kb = jax.random.split(key, 3)
    x = jax.random.normal(kx, (N, Cin, H, W), dtype=jnp.float32)
    weight = 0.1 * jax.random.normal(kw, (Cout, Cin, 3, 3), dtype=jnp.float32)
    bias = 0.1 * jax.random.normal(kb, (Cout,), dtype=jnp.float32)

    out = conv3x3_bn_relu(x, weight, bias)
    out = jax.block_until_ready(out)

    ref = jax.block_until_ready(_reference(x, weight, bias))
    assert out.shape == (N, Cout, H, W)
    assert jnp.allclose(out, ref, atol=2e-3, rtol=2e-3), "mismatch vs reference"

    print("KERNEL_OK")
</pallas_src>

<mosaic_0001>
module attributes {stable_mosaic.version = 11 : i64} {
  func.func @_conv_bn_relu_kernel(%arg0: i32, %arg1: memref<2x16x16x4xf32, #tpu.memory_space<vmem>>, %arg2: memref<8x36xf32, #tpu.memory_space<vmem>>, %arg3: memref<8x1xf32, #tpu.memory_space<vmem>>, %arg4: memref<8x512xf32, #tpu.memory_space<vmem>>) attributes {dimension_semantics = [#tpu.dimension_semantics<arbitrary>], iteration_bounds = array<i64: 1>, scalar_prefetch = 0 : i64, scratch_operands = 0 : i64, tpu.core_type = #tpu.core_type<tc>, window_params = [{pipeline_mode = #tpu.pipeline_mode<synchronous>, transform_indices = @transform_0, window_bounds = array<i64: 2, 16, 16, 4>}, {pipeline_mode = #tpu.pipeline_mode<synchronous>, transform_indices = @transform_1, window_bounds = array<i64: 8, 36>}, {pipeline_mode = #tpu.pipeline_mode<synchronous>, transform_indices = @transform_2, window_bounds = array<i64: 8, 1>}, {pipeline_mode = #tpu.pipeline_mode<synchronous>, transform_indices = @transform_3, window_bounds = array<i64: 8, 512>}]} {
    %c0 = arith.constant 0 : index
    %c0_0 = arith.constant 0 : index
    %c0_1 = arith.constant 0 : index
    %c0_2 = arith.constant 0 : index
    %0 = vector.load %arg1[%c0, %c0_0, %c0_1, %c0_2] : memref<2x16x16x4xf32, #tpu.memory_space<vmem>>, vector<2x16x16x4xf32>
    %c0_3 = arith.constant 0 : index
    %c0_4 = arith.constant 0 : index
    %1 = vector.load %arg2[%c0_3, %c0_4] : memref<8x36xf32, #tpu.memory_space<vmem>>, vector<8x36xf32>
    %c0_5 = arith.constant 0 : index
    %c0_6 = arith.constant 0 : index
    %2 = vector.load %arg3[%c0_5, %c0_6] : memref<8x1xf32, #tpu.memory_space<vmem>>, vector<8x1xf32>
    %cst = arith.constant 0.000000e+00 : f32
    %3 = vector.broadcast %cst : f32 to vector<2x16x1x4xf32>
    %4 = tpu.concatenate %3, %0, %3 in 2 : vector<2x16x1x4xf32>, vector<2x16x16x4xf32>, vector<2x16x1x4xf32> -> vector<2x16x18x4xf32>
    %cst_7 = arith.constant 0.000000e+00 : f32
    %5 = vector.broadcast %cst_7 : f32 to vector<2x1x18x4xf32>
    %6 = tpu.concatenate %5, %4, %5 in 1 : vector<2x1x18x4xf32>, vector<2x16x18x4xf32>, vector<2x1x18x4xf32> -> vector<2x18x18x4xf32>
    %7 = vector.extract_strided_slice %6 {offsets = [0, 0, 0, 0], sizes = [2, 16, 16, 4], strides = [1, 1, 1, 1]} : vector<2x18x18x4xf32> to vector<2x16x16x4xf32>
    %8 = vector.extract_strided_slice %6 {offsets = [0, 0, 1, 0], sizes = [2, 16, 16, 4], strides = [1, 1, 1, 1]} : vector<2x18x18x4xf32> to vector<2x16x16x4xf32>
    %9 = vector.extract_strided_slice %6 {offsets = [0, 0, 2, 0], sizes = [2, 16, 16, 4], strides = [1, 1, 1, 1]} : vector<2x18x18x4xf32> to vector<2x16x16x4xf32>
    %10 = vector.extract_strided_slice %6 {offsets = [0, 1, 0, 0], sizes = [2, 16, 16, 4], strides = [1, 1, 1, 1]} : vector<2x18x18x4xf32> to vector<2x16x16x4xf32>
    %11 = vector.extract_strided_slice %6 {offsets = [0, 1, 1, 0], sizes = [2, 16, 16, 4], strides = [1, 1, 1, 1]} : vector<2x18x18x4xf32> to vector<2x16x16x4xf32>
    %12 = vector.extract_strided_slice %6 {offsets = [0, 1, 2, 0], sizes = [2, 16, 16, 4], strides = [1, 1, 1, 1]} : vector<2x18x18x4xf32> to vector<2x16x16x4xf32>
    %13 = vector.extract_strided_slice %6 {offsets = [0, 2, 0, 0], sizes = [2, 16, 16, 4], strides = [1, 1, 1, 1]} : vector<2x18x18x4xf32> to vector<2x16x16x4xf32>
    %14 = vector.extract_strided_slice %6 {offsets = [0, 2, 1, 0], sizes = [2, 16, 16, 4], strides = [1, 1, 1, 1]} : vector<2x18x18x4xf32> to vector<2x16x16x4xf32>
    %15 = vector.extract_strided_slice %6 {offsets = [0, 2, 2, 0], sizes = [2, 16, 16, 4], strides = [1, 1, 1, 1]} : vector<2x18x18x4xf32> to vector<2x16x16x4xf32>
    %16 = tpu.concatenate %7, %8, %9, %10, %11, %12, %13, %14, %15 in 3 : vector<2x16x16x4xf32>, vector<2x16x16x4xf32>, vector<2x16x16x4xf32>, vector<2x16x16x4xf32>, vector<2x16x16x4xf32>, vector<2x16x16x4xf32>, vector<2x16x16x4xf32>, vector<2x16x16x4xf32>, vector<2x16x16x4xf32> -> vector<2x16x16x36xf32>
    %17 = vector.shape_cast %16 : vector<2x16x16x36xf32> to vector<512x36xf32>
    %cst_8 = arith.constant dense<0.000000e+00> : vector<8x512xf32>
    %18 = tpu.matmul %1, %17, %cst_8 {dimension_numbers = #tpu.dot_dimension_numbers<[1], [1], [0], [0], [0, 0, 1, 0], [], []>} : vector<8x36xf32>, vector<512x36xf32>, vector<8x512xf32> -> vector<8x512xf32>
    %19 = vector.broadcast %2 : vector<8x1xf32> to vector<8x512xf32>
    %20 = arith.addf %18, %19 : vector<8x512xf32>
    %cst_9 = arith.constant dense<0.000000e+00> : vector<8xf32>
    %21 = vector.multi_reduction <add>, %20, %cst_9 [1] : vector<8x512xf32> to vector<8xf32>
    %22 = vector.shape_cast %21 : vector<8xf32> to vector<8x1xf32>
    %23 = arith.mulf %20, %20 : vector<8x512xf32>
    %cst_10 = arith.constant dense<0.000000e+00> : vector<8xf32>
    %24 = vector.multi_reduction <add>, %23, %cst_10 [1] : vector<8x512xf32> to vector<8xf32>
    %25 = vector.shape_cast %24 : vector<8xf32> to vector<8x1xf32>
    %cst_11 = arith.constant 0.001953125 : f32
    %26 = vector.broadcast %cst_11 : f32 to vector<8x1xf32>
    %27 = arith.mulf %22, %26 : vector<8x1xf32>
    %cst_12 = arith.constant 0.001953125 : f32
    %28 = vector.broadcast %cst_12 : f32 to vector<8x1xf32>
    %29 = arith.mulf %25, %28 : vector<8x1xf32>
    %30 = arith.mulf %27, %27 : vector<8x1xf32>
    %31 = arith.subf %29, %30 : vector<8x1xf32>
    %32 = vector.broadcast %27 : vector<8x1xf32> to vector<8x512xf32>
    %33 = arith.subf %20, %32 : vector<8x512xf32>
    %cst_13 = arith.constant 9.99999974E-6 : f32
    %34 = vector.broadcast %cst_13 : f32 to vector<8x1xf32>
    %35 = arith.addf %31, %34 : vector<8x1xf32>
    %36 = math.rsqrt %35 : vector<8x1xf32>
    %37 = vector.broadcast %36 : vector<8x1xf32> to vector<8x512xf32>
    %38 = arith.mulf %33, %37 : vector<8x512xf32>
    %cst_14 = arith.constant 0.000000e+00 : f32
    %39 = vector.broadcast %cst_14 : f32 to vector<8x512xf32>
    %40 = arith.maximumf %38, %39 : vector<8x512xf32>
    %c0_15 = arith.constant 0 : index
    %c0_16 = arith.constant 0 : index
    %41 = vector.load %arg4[%c0_15, %c0_16] : memref<8x512xf32, #tpu.memory_space<vmem>>, vector<8x512xf32>
    tpu.vector_store %arg4[%c0_15, %c0_16], %40 {strides = array<i32>} : memref<8x512xf32, #tpu.memory_space<vmem>>, vector<8x512xf32>,
    return
  }
  func.func @transform_0(%arg0: i32) -> (i32, i32, i32, i32) {
    %c0_i32 = arith.constant 0 : i32
    %c0_i32_0 = arith.constant 0 : i32
    %c0_i32_1 = arith.constant 0 : i32
    %c0_i32_2 = arith.constant 0 : i32
    %c0_i32_3 = arith.constant 0 : i32
    return %c0_i32, %c0_i32_0, %c0_i32_1, %c0_i32_2 : i32, i32, i32, i32
  }
  func.func @transform_1(%arg0: i32) -> (i32, i32) {
    %c0_i32 = arith.constant 0 : i32
    %c0_i32_0 = arith.constant 0 : i32
    %c0_i32_1 = arith.constant 0 : i32
    return %c0_i32, %c0_i32_0 : i32, i32
  }
  func.func @transform_2(%arg0: i32) -> (i32, i32) {
    %c0_i32 = arith.constant 0 : i32
    %c0_i32_0 = arith.constant 0 : i32
    %c0_i32_1 = arith.constant 0 : i32
    return %c0_i32, %c0_i32_0 : i32, i32
  }
  func.func @transform_3(%arg0: i32) -> (i32, i32) {
    %c0_i32 = arith.constant 0 : i32
    %c0_i32_0 = arith.constant 0 : i32
    %c0_i32_1 = arith.constant 0 : i32
    return %c0_i32, %c0_i32_0 : i32, i32
  }
}

</mosaic_0001>

<llo_original>
// kernel: tpu_custom_call.1
$region0: #{tpu_custom_call.1}
  #allocation0 [shape = 'u32[]', space=smem, size = 0x4, offset = 0x4, fixed_abs, tag = 'smem constant byte address 0x4 - core index']
  #allocation1 [shape = 'u32[144,128]{1,0:T(1,128)}', space=vmem, size = 0x12000, scoped, tag = 'internal scratch']
  %s0 = inlined_call_operand.vmem [shape: f32[2,16,16,4], index: 0, kind: input, shape index: {}]
  %s1 = inlined_call_operand.vmem [shape: f32[8,36], index: 1, kind: input, shape index: {}]
  %s2 = inlined_call_operand.vmem [shape: f32[8,1], index: 2, kind: input, shape index: {}]
  %s3 = inlined_call_operand.hbm [shape: f32[8,512], index: 3, kind: output, shape index: {}]
  %s4 = sld [smem:[#allocation0]]
  $region22: #{tpu_custom_call.1} parent=0
    _
  %s6 = ssub.s32 1, %s4
  %s7 = scalar_select 0, %s6, %s4
  $region1: #{tpu_custom_call.1} parent=0
    #allocation2 [shape = 'u8[16384]{0}', space=vmem, size = 0x4000, scoped, tag = 'output window, operand 0, single buffered']
    #allocation3 [shape = 's32[1]{0}', space=sflag, size = 0x4, scoped, tag = 'scoped memory for tpu_custom_call.1']
    %8 = vsyncpa [#allocation3], 0
    // Predicated region
    $region2: #{tpu_custom_call.1} parent=1 // pred_check
      _
    $region3: #{tpu_custom_call.1} parent=1 // pred_check_branch
      %10 = sbr.rel (0) target = $region5
    $region4: #{tpu_custom_call.1} parent=1 // pred_region
      _
    $region5: #{tpu_custom_call.1} parent=1 // pred_fallthru
      _
    // Predicated region
    $region6: #{tpu_custom_call.1} parent=1 // pred_check
      _
    $region7: #{tpu_custom_call.1} parent=1 // pred_check_branch
      %12 = sbr.rel (0) target = $region9
    $region8: #{tpu_custom_call.1} parent=1 // pred_region
      _
    $region9: #{tpu_custom_call.1} parent=1 // pred_fallthru
      _
    // Predicated region
    $region10: #{tpu_custom_call.1} parent=1 // pred_check
      _
    $region11: #{tpu_custom_call.1} parent=1 // pred_check_branch
      %14 = sbr.rel (0) target = $region13
    $region12: #{tpu_custom_call.1} parent=1 // pred_region
      _
    $region13: #{tpu_custom_call.1} parent=1 // pred_fallthru
      _
    %v15 = vld [vmem:[%s0] sm:$0xff]
    %v16 = vld [vmem:[%s0 + $0x8] sm:$0xff]
    %v17 = vld [vmem:[%s0 + $0x10] sm:$0xff]
    %v18 = vld [vmem:[%s0 + $0x18] sm:$0xff]
    %v19 = vld [vmem:[%s0 + $0x20] sm:$0xff]
    %v20 = vld [vmem:[%s0 + $0x28] sm:$0xff]
    %v21 = vld [vmem:[%s0 + $0x30] sm:$0xff]
    %v22 = vld [vmem:[%s0 + $0x38] sm:$0xff]
    %v23 = vld [vmem:[%s0 + $0x40] sm:$0xff]
    %v24 = vld [vmem:[%s0 + $0x48] sm:$0xff]
    %v25 = vld [vmem:[%s0 + $0x50] sm:$0xff]
    %v26 = vld [vmem:[%s0 + $0x58] sm:$0xff]
    %v27 = vld [vmem:[%s0 + $0x60] sm:$0xff]
    %v28 = vld [vmem:[%s0 + $0x68] sm:$0xff]
    %v29 = vld [vmem:[%s0 + $0x70] sm:$0xff]
    %v30 = vld [vmem:[%s0 + $0x78] sm:$0xff]
    %v31 = vld [vmem:[%s0 + $0x80] sm:$0xff]
    %v32 = vld [vmem:[%s0 + $0x88] sm:$0xff]
    %v33 = vld [vmem:[%s0 + $0x90] sm:$0xff]
    %v34 = vld [vmem:[%s0 + $0x98] sm:$0xff]
    %v35 = vld [vmem:[%s0 + $0xa0] sm:$0xff]
    %v36 = vld [vmem:[%s0 + $0xa8] sm:$0xff]
    %v37 = vld [vmem:[%s0 + $0xb0] sm:$0xff]
    %v38 = vld [vmem:[%s0 + $0xb8] sm:$0xff]
    %v39 = vld [vmem:[%s0 + $0xc0] sm:$0xff]
    %v40 = vld [vmem:[%s0 + $0xc8] sm:$0xff]
    %v41 = vld [vmem:[%s0 + $0xd0] sm:$0xff]
    %v42 = vld [vmem:[%s0 + $0xd8] sm:$0xff]
    %v43 = vld [vmem:[%s0 + $0xe0] sm:$0xff]
    %v44 = vld [vmem:[%s0 + $0xe8] sm:$0xff]
    %v45 = vld [vmem:[%s0 + $0xf0] sm:$0xff]
    %v46 = vld [vmem:[%s0 + $0xf8] sm:$0xff]
    %v47 = vld [vmem:[%s0 + $0x100] sm:$0xff]
    %v48 = vld [vmem:[%s0 + $0x108] sm:$0xff]
    %v49 = vld [vmem:[%s0 + $0x110] sm:$0xff]
    %v50 = vld [vmem:[%s0 + $0x118] sm:$0xff]
    %v51 = vld [vmem:[%s0 + $0x120] sm:$0xff]
    %v52 = vld [vmem:[%s0 + $0x128] sm:$0xff]
    %v53 = vld [vmem:[%s0 + $0x130] sm:$0xff]
    %v54 = vld [vmem:[%s0 + $0x138] sm:$0xff]
    %v55 = vld [vmem:[%s0 + $0x140] sm:$0xff]
    %v56 = vld [vmem:[%s0 + $0x148] sm:$0xff]
    %v57 = vld [vmem:[%s0 + $0x150] sm:$0xff]
    %v58 = vld [vmem:[%s0 + $0x158] sm:$0xff]
    %v59 = vld [vmem:[%s0 + $0x160] sm:$0xff]
    %v60 = vld [vmem:[%s0 + $0x168] sm:$0xff]
    %v61 = vld [vmem:[%s0 + $0x170] sm:$0xff]
    %v62 = vld [vmem:[%s0 + $0x178] sm:$0xff]
    %v63 = vld [vmem:[%s0 + $0x180] sm:$0xff]
    %v64 = vld [vmem:[%s0 + $0x188] sm:$0xff]
    %v65 = vld [vmem:[%s0 + $0x190] sm:$0xff]
    %v66 = vld [vmem:[%s0 + $0x198] sm:$0xff]
    %v67 = vld [vmem:[%s0 + $0x1a0] sm:$0xff]
    %v68 = vld [vmem:[%s0 + $0x1a8] sm:$0xff]
    %v69 = vld [vmem:[%s0 + $0x1b0] sm:$0xff]
    %v70 = vld [vmem:[%s0 + $0x1b8] sm:$0xff]
    %v71 = vld [vmem:[%s0 + $0x1c0] sm:$0xff]
    %v72 = vld [vmem:[%s0 + $0x1c8] sm:$0xff]
    %v73 = vld [vmem:[%s0 + $0x1d0] sm:$0xff]
    %v74 = vld [vmem:[%s0 + $0x1d8] sm:$0xff]
    %v75 = vld [vmem:[%s0 + $0x1e0] sm:$0xff]
    %v76 = vld [vmem:[%s0 + $0x1e8] sm:$0xff]
    %v77 = vld [vmem:[%s0 + $0x1f0] sm:$0xff]
    %v78 = vld [vmem:[%s0 + $0x1f8] sm:$0xff]
    %v79 = vld [vmem:[%s1] sm:$0xff]
    %v80 = vld [vmem:[%s2] sm:$0xff]
    %vm145 = vcmask 1040384
    %v146 = vrot.slane %v15, 7
    %v147 = vrot.slane %v16, 7
    %v148 = vsel %vm145, %v146, %v147
    %v149 = vrot.slane %v17, 7
    %v150 = vrot.slane %v18, 7
    %v151 = vsel %vm145, %v149, %v150
    %v152 = vrot.slane %v19, 7
    %v153 = vrot.slane %v20, 7
    %v154 = vsel %vm145, %v152, %v153
    %v155 = vrot.slane %v21, 7
    %v156 = vrot.slane %v22, 7
    %v157 = vsel %vm145, %v155, %v156
    %v158 = vrot.slane %v23, 7
    %v159 = vrot.slane %v24, 7
    %v160 = vsel %vm145, %v158, %v159
    %v161 = vrot.slane %v25, 7
    %v162 = vrot.slane %v26, 7
    %v163 = vsel %vm145, %v161, %v162
    %v164 = vrot.slane %v27, 7
    %v165 = vrot.slane %v28, 7
    %v166 = vsel %vm145, %v164, %v165
    %v167 = vrot.slane %v29, 7
    %v168 = vrot.slane %v30, 7
    %v169 = vsel %vm145, %v167, %v168
    %v170 = vrot.slane %v31, 7
    %v171 = vrot.slane %v32, 7
    %v172 = vsel %vm145, %v170, %v171
    %v173 = vrot.slane %v33, 7
    %v174 = vrot.slane %v34, 7
    %v175 = vsel %vm145, %v173, %v174
    %v176 = vrot.slane %v35, 7
    %v177 = vrot.slane %v36, 7
    %v178 = vsel %vm145, %v176, %v177
    %v179 = vrot.slane %v37, 7
    %v180 = vrot.slane %v38, 7
    %v181 = vsel %vm145, %v179, %v180
    %v182 = vrot.slane %v39, 7
    %v183 = vrot.slane %v40, 7
    %v184 = vsel %vm145, %v182, %v183
    %v185 = vrot.slane %v41, 7
    %v186 = vrot.slane %v42, 7
    %v187 = vsel %vm145, %v185, %v186
    %v188 = vrot.slane %v43, 7
    %v189 = vrot.slane %v44, 7
    %v190 = vsel %vm145, %v188, %v189
    %v191 = vrot.slane %v45, 7
    %v192 = vrot.slane %v46, 7
    %v193 = vsel %vm145, %v191, %v192
    %v194 = vrot.slane %v47, 7
    %v195 = vrot.slane %v48, 7
    %v196 = vsel %vm145, %v194, %v195
    %v197 = vrot.slane %v49, 7
    %v198 = vrot.slane %v50, 7
    %v199 = vsel %vm145, %v197, %v198
    %v200 = vrot.slane %v51, 7
    %v201 = vrot.slane %v52, 7
    %v202 = vsel %vm145, %v200, %v201
    %v203 = vrot.slane %v53, 7
    %v204 = vrot.slane %v54, 7
    %v205 = vsel %vm145, %v203, %v204
    %v206 = vrot.slane %v55, 7
    %v207 = vrot.slane %v56, 7
    %v208 = vsel %vm145, %v206, %v207
    %v209 = vrot.slane %v57, 7
    %v210 = vrot.slane %v58, 7
    %v211 = vsel %vm145, %v209, %v210
    %v212 = vrot.slane %v59, 7
    %v213 = vrot.slane %v60, 7
    %v214 = vsel %vm145, %v212, %v213
    %v215 = vrot.slane %v61, 7
    %v216 = vrot.slane %v62, 7
    %v217 = vsel %vm145, %v215, %v216
    %v218 = vrot.slane %v63, 7
    %v219 = vrot.slane %v64, 7
    %v220 = vsel %vm145, %v218, %v219
    %v221 = vrot.slane %v65, 7
    %v222 = vrot.slane %v66, 7
    %v223 = vsel %vm145, %v221, %v222
    %v224 = vrot.slane %v67, 7
    %v225 = vrot.slane %v68, 7
    %v226 = vsel %vm145, %v224, %v225
    %v227 = vrot.slane %v69, 7
    %v228 = vrot.slane %v70, 7
    %v229 = vsel %vm145, %v227, %v228
    %v230 = vrot.slane %v71, 7
    %v231 = vrot.slane %v72, 7
    %v232 = vsel %vm145, %v230, %v231
    %v233 = vrot.slane %v73, 7
    %v234 = vrot.slane %v74, 7
    %v235 = vsel %vm145, %v233, %v234
    %v236 = vrot.slane %v75, 7
    %v237 = vrot.slane %v76, 7
    %v238 = vsel %vm145, %v236, %v237
    %v239 = vrot.slane %v77, 7
    %v240 = vrot.slane %v78, 7
    %v241 = vsel %vm145, %v239, %v240
    %v336 = vsel %vm145, 0.0, %v146
    %v337 = vsel %vm145, 0.0, %v149
    %v338 = vsel %vm145, 0.0, %v152
    %v339 = vsel %vm145, 0.0, %v155
    %v340 = vsel %vm145, 0.0, %v158
    %v341 = vsel %vm145, 0.0, %v161
    %v342 = vsel %vm145, 0.0, %v164
    %v343 = vsel %vm145, 0.0, %v167
    %v344 = vsel %vm145, 0.0, %v170
    %v345 = vsel %vm145, 0.0, %v173
    %v346 = vsel %vm145, 0.0, %v176
    %v347 = vsel %vm145, 0.0, %v179
    %v348 = vsel %vm145, 0.0, %v182
    %v349 = vsel %vm145, 0.0, %v185
    %v350 = vsel %vm145, 0.0, %v188
    %v351 = vsel %vm145, 0.0, %v191
    %v352 = vsel %vm145, 0.0, %v194
    %v353 = vsel %vm145, 0.0, %v197
    %v354 = vsel %vm145, 0.0, %v200
    %v355 = vsel %vm145, 0.0, %v203
    %v356 = vsel %vm145, 0.0, %v206
    %v357 = vsel %vm145, 0.0, %v209
    %v358 = vsel %vm145, 0.0, %v212
    %v359 = vsel %vm145, 0.0, %v215
    %v360 = vsel %vm145, 0.0, %v218
    %v361 = vsel %vm145, 0.0, %v221
    %v362 = vsel %vm145, 0.0, %v224
    %v363 = vsel %vm145, 0.0, %v227
    %v364 = vsel %vm145, 0.0, %v230
    %v365 = vsel %vm145, 0.0, %v233
    %v366 = vsel %vm145, 0.0, %v236
    %v367 = vsel %vm145, 0.0, %v239
    %v368 = vsel %vm145, %v147, 0.0
    %v369 = vsel %vm145, %v150, 0.0
    %v370 = vsel %vm145, %v153, 0.0
    %v371 = vsel %vm145, %v156, 0.0
    %v372 = vsel %vm145, %v159, 0.0
    %v373 = vsel %vm145, %v162, 0.0
    %v374 = vsel %vm145, %v165, 0.0
    %v375 = vsel %vm145, %v168, 0.0
    %v376 = vsel %vm145, %v171, 0.0
    %v377 = vsel %vm145, %v174, 0.0
    %v378 = vsel %vm145, %v177, 0.0
    %v379 = vsel %vm145, %v180, 0.0
    %v380 = vsel %vm145, %v183, 0.0
    %v381 = vsel %vm145, %v186, 0.0
    %v382 = vsel %vm145, %v189, 0.0
    %v383 = vsel %vm145, %v192, 0.0
    %v384 = vsel %vm145, %v195, 0.0
    %v385 = vsel %vm145, %v198, 0.0
    %v386 = vsel %vm145, %v201, 0.0
    %v387 = vsel %vm145, %v204, 0.0
    %v388 = vsel %vm145, %v207, 0.0
    %v389 = vsel %vm145, %v210, 0.0
    %v390 = vsel %vm145, %v213, 0.0
    %v391 = vsel %vm145, %v216, 0.0
    %v392 = vsel %vm145, %v219, 0.0
    %v393 = vsel %vm145, %v222, 0.0
    %v394 = vsel %vm145, %v225, 0.0
    %v395 = vsel %vm145, %v228, 0.0
    %v396 = vsel %vm145, %v231, 0.0
    %v397 = vsel %vm145, %v234, 0.0
    %v398 = vsel %vm145, %v237, 0.0
    %v399 = vsel %vm145, %v240, 0.0
    %vm461 = vcmask 1046528
    %v462 = vrot.slane 0.0, 1
    %v463 = vsel %vm461, %v462, %v462
    %v464 = vrot.slane %v336, 1
    %v465 = vrot.slane %v148, 1
    %v466 = vsel %vm461, %v464, %v465
    %v467 = vrot.slane %v368, 1
    %v468 = vsel %vm461, %v465, %v467
    %v469 = vrot.slane %v337, 1
    %v470 = vrot.slane %v151, 1
    %v471 = vsel %vm461, %v469, %v470
    %v472 = vrot.slane %v369, 1
    %v473 = vsel %vm461, %v470, %v472
    %v474 = vrot.slane %v338, 1
    %v475 = vrot.slane %v154, 1
    %v476 = vsel %vm461, %v474, %v475
    %v477 = vrot.slane %v370, 1
    %v478 = vsel %vm461, %v475, %v477
    %v479 = vrot.slane %v339, 1
    %v480 = vrot.slane %v157, 1
    %v481 = vsel %vm461, %v479, %v480
    %v482 = vrot.slane %v371, 1
    %v483 = vsel %vm461, %v480, %v482
    %v484 = vrot.slane %v340, 1
    %v485 = vrot.slane %v160, 1
    %v486 = vsel %vm461, %v484, %v485
    %v487 = vrot.slane %v372, 1
    %v488 = vsel %vm461, %v485, %v487
    %v489 = vrot.slane %v341, 1
    %v490 = vrot.slane %v163, 1
    %v491 = vsel %vm461, %v489, %v490
    %v492 = vrot.slane %v373, 1
    %v493 = vsel %vm461, %v490, %v492
    %v494 = vrot.slane %v342, 1
    %v495 = vrot.slane %v166, 1
    %v496 = vsel %vm461, %v494, %v495
    %v497 = vrot.slane %v374, 1
    %v498 = vsel %vm461, %v495, %v497
    %v499 = vrot.slane %v343, 1
    %v500 = vrot.slane %v169, 1
    %v501 = vsel %vm461, %v499, %v500
    %v502 = vrot.slane %v375, 1
    %v503 = vsel %vm461, %v500, %v502
    %v504 = vrot.slane %v344, 1
    %v505 = vrot.slane %v172, 1
    %v506 = vsel %vm461, %v504, %v505
    %v507 = vrot.slane %v376, 1
    %v508 = vsel %vm461, %v505, %v507
    %v509 = vrot.slane %v345, 1
    %v510 = vrot.slane %v175, 1
    %v511 = vsel %vm461, %v509, %v510
    %v512 = vrot.slane %v377, 1
    %v513 = vsel %vm461, %v510, %v512
    %v514 = vrot.slane %v346, 1
    %v515 = vrot.slane %v178, 1
    %v516 = vsel %vm461, %v514, %v515
    %v517 = vrot.slane %v378, 1
    %v518 = vsel %vm461, %v515, %v517
    %v519 = vrot.slane %v347, 1
    %v520 = vrot.slane %v181, 1
    %v521 = vsel %vm461, %v519, %v520
    %v522 = vrot.slane %v379, 1
    %v523 = vsel %vm461, %v520, %v522
    %v524 = vrot.slane %v348, 1
    %v525 = vrot.slane %v184, 1
    %v526 = vsel %vm461, %v524, %v525
    %v527 = vrot.slane %v380, 1
    %v528 = vsel %vm461, %v525, %v527
    %v529 = vrot.slane %v349, 1
    %v530 = vrot.slane %v187, 1
    %v531 = vsel %vm461, %v529, %v530
    %v532 = vrot.slane %v381, 1
    %v533 = vsel %vm461, %v530, %v532
    %v534 = vrot.slane %v350, 1
    %v535 = vrot.slane %v190, 1
    %v536 = vsel %vm461, %v534, %v535
    %v537 = vrot.slane %v382, 1
    %v538 = vsel %vm461, %v535, %v537
    %v539 = vrot.slane %v352, 1
    %v540 = vrot.slane %v196, 1
    %v541 = vsel %vm461, %v539, %v540
    %v542 = vrot.slane %v384, 1
    %v543 = vsel %vm461, %v540, %v542
    %v544 = vrot.slane %v353, 1
    %v545 = vrot.slane %v199, 1
    %v546 = vsel %vm461, %v544, %v545
    %v547 = vrot.slane %v385, 1
    %v548 = vsel %vm461, %v545, %v547
    %v549 = vrot.slane %v354, 1
    %v550 = vrot.slane %v202, 1
    %v551 = vsel %vm461, %v549, %v550
    %v552 = vrot.slane %v386, 1
    %v553 = vsel %vm461, %v550, %v552
    %v554 = vrot.slane %v355, 1
    %v555 = vrot.slane %v205, 1
    %v556 = vsel %vm461, %v554, %v555
    %v557 = vrot.slane %v387, 1
    %v558 = vsel %vm461, %v555, %v557
    %v559 = vrot.slane %v356, 1
    %v560 = vrot.slane %v208, 1
    %v561 = vsel %vm461, %v559, %v560
    %v562 = vrot.slane %v388, 1
    %v563 = vsel %vm461, %v560, %v562
    %v564 = vrot.slane %v357, 1
    %v565 = vrot.slane %v211, 1
    %v566 = vsel %vm461, %v564, %v565
    %v567 = vrot.slane %v389, 1
    %v568 = vsel %vm461, %v565, %v567
    %v569 = vrot.slane %v358, 1
    %v570 = vrot.slane %v214, 1
    %v571 = vsel %vm461, %v569, %v570
    %v572 = vrot.slane %v390, 1
    %v573 = vsel %vm461, %v570, %v572
    %v574 = vrot.slane %v359, 1
    %v575 = vrot.slane %v217, 1
    %v576 = vsel %vm461, %v574, %v575
    %v577 = vrot.slane %v391, 1
    %v578 = vsel %vm461, %v575, %v577
    %v579 = vrot.slane %v360, 1
    %v580 = vrot.slane %v220, 1
    %v581 = vsel %vm461, %v579, %v580
    %v582 = vrot.slane %v392, 1
    %v583 = vsel %vm461, %v580, %v582
    %v584 = vrot.slane %v361, 1
    %v585 = vrot.slane %v223, 1
    %v586 = vsel %vm461, %v584, %v585
    %v587 = vrot.slane %v393, 1
    %v588 = vsel %vm461, %v585, %v587
    %v589 = vrot.slane %v362, 1
    %v590 = vrot.slane %v226, 1
    %v591 = vsel %vm461, %v589, %v590
    %v592 = vrot.slane %v394, 1
    %v593 = vsel %vm461, %v590, %v592
    %v594 = vrot.slane %v363, 1
    %v595 = vrot.slane %v229, 1
    %v596 = vsel %vm461, %v594, %v595
    %v597 = vrot.slane %v395, 1
    %v598 = vsel %vm461, %v595, %v597
    %v599 = vrot.slane %v364, 1
    %v600 = vrot.slane %v232, 1
    %v601 = vsel %vm461, %v599, %v600
    %v602 = vrot.slane %v396, 1
    %v603 = vsel %vm461, %v600, %v602
    %v604 = vrot.slane %v365, 1
    %v605 = vrot.slane %v235, 1
    %v606 = vsel %vm461, %v604, %v605
    %v607 = vrot.slane %v397, 1
    %v608 = vsel %vm461, %v605, %v607
    %v609 = vrot.slane %v366, 1
    %v610 = vrot.slane %v238, 1
    %v611 = vsel %vm461, %v609, %v610
    %v612 = vrot.slane %v398, 1
    %v613 = vsel %vm461, %v610, %v612
    %614 = vrot.lane.b32.xlu0 %v463, 4
    %v615 = vpop.permute.xlu0 %614
    %616 = vrot.lane.b32.xlu0 %v466, 4
    %v617 = vpop.permute.xlu0 %616
    %618 = vrot.lane.b32.xlu0 %v468, 4
    %v619 = vpop.permute.xlu0 %618
    %620 = vrot.lane.b32.xlu0 %v471, 4
    %v621 = vpop.permute.xlu0 %620
    %622 = vrot.lane.b32.xlu0 %v473, 4
    %v623 = vpop.permute.xlu0 %622
    %624 = vrot.lane.b32.xlu0 %v476, 4
    %v625 = vpop.permute.xlu0 %624
    %626 = vrot.lane.b32.xlu0 %v478, 4
    %v627 = vpop.permute.xlu0 %626
    %628 = vrot.lane.b32.xlu0 %v481, 4
    %v629 = vpop.permute.xlu0 %628
    %630 = vrot.lane.b32.xlu0 %v483, 4
    %v631 = vpop.permute.xlu0 %630
    %632 = vrot.lane.b32.xlu0 %v486, 4
    %v633 = vpop.permute.xlu0 %632
    %634 = vrot.lane.b32.xlu0 %v488, 4
    %v635 = vpop.permute.xlu0 %634
    %636 = vrot.lane.b32.xlu0 %v491, 4
    %v637 = vpop.permute.xlu0 %636
    %638 = vrot.lane.b32.xlu0 %v493, 4
    %v639 = vpop.permute.xlu0 %638
    %640 = vrot.lane.b32.xlu0 %v496, 4
    %v641 = vpop.permute.xlu0 %640
    %642 = vrot.lane.b32.xlu0 %v498, 4
    %v643 = vpop.permute.xlu0 %642
    %644 = vrot.lane.b32.xlu0 %v501, 4
    %v645 = vpop.permute.xlu0 %644
    %646 = vrot.lane.b32.xlu0 %v503, 4
    %v647 = vpop.permute.xlu0 %646
    %648 = vrot.lane.b32.xlu0 %v506, 4
    %v649 = vpop.permute.xlu0 %648
    %650 = vrot.lane.b32.xlu0 %v508, 4
    %v651 = vpop.permute.xlu0 %650
    %652 = vrot.lane.b32.xlu0 %v511, 4
    %v653 = vpop.permute.xlu0 %652
    %654 = vrot.lane.b32.xlu0 %v513, 4
    %v655 = vpop.permute.xlu0 %654
    %656 = vrot.lane.b32.xlu0 %v516, 4
    %v657 = vpop.permute.xlu0 %656
    %658 = vrot.lane.b32.xlu0 %v518, 4
    %v659 = vpop.permute.xlu0 %658
    %660 = vrot.lane.b32.xlu0 %v521, 4
    %v661 = vpop.permute.xlu0 %660
    %662 = vrot.lane.b32.xlu0 %v523, 4
    %v663 = vpop.permute.xlu0 %662
    %664 = vrot.lane.b32.xlu0 %v526, 4
    %v665 = vpop.permute.xlu0 %664
    %666 = vrot.lane.b32.xlu0 %v528, 4
    %v667 = vpop.permute.xlu0 %666
    %668 = vrot.lane.b32.xlu0 %v531, 4
    %v669 = vpop.permute.xlu0 %668
    %670 = vrot.lane.b32.xlu0 %v533, 4
    %v671 = vpop.permute.xlu0 %670
    %672 = vrot.lane.b32.xlu0 %v536, 4
    %v673 = vpop.permute.xlu0 %672
    %674 = vrot.lane.b32.xlu0 %v538, 4
    %v675 = vpop.permute.xlu0 %674
    %676 = vrot.lane.b32.xlu0 %v541, 4
    %v677 = vpop.permute.xlu0 %676
    %678 = vrot.lane.b32.xlu0 %v543, 4
    %v679 = vpop.permute.xlu0 %678
    %680 = vrot.lane.b32.xlu0 %v546, 4
    %v681 = vpop.permute.xlu0 %680
    %682 = vrot.lane.b32.xlu0 %v548, 4
    %v683 = vpop.permute.xlu0 %682
    %684 = vrot.lane.b32.xlu0 %v551, 4
    %v685 = vpop.permute.xlu0 %684
    %686 = vrot.lane.b32.xlu0 %v553, 4
    %v687 = vpop.permute.xlu0 %686
    %688 = vrot.lane.b32.xlu0 %v556, 4
    %v689 = vpop.permute.xlu0 %688
    %690 = vrot.lane.b32.xlu0 %v558, 4
    %v691 = vpop.permute.xlu0 %690
    %692 = vrot.lane.b32.xlu0 %v561, 4
    %v693 = vpop.permute.xlu0 %692
    %694 = vrot.lane.b32.xlu0 %v563, 4
    %v695 = vpop.permute.xlu0 %694
    %696 = vrot.lane.b32.xlu0 %v566, 4
    %v697 = vpop.permute.xlu0 %696
    %698 = vrot.lane.b32.xlu0 %v568, 4
    %v699 = vpop.permute.xlu0 %698
    %700 = vrot.lane.b32.xlu0 %v571, 4
    %v701 = vpop.permute.xlu0 %700
    %702 = vrot.lane.b32.xlu0 %v573, 4
    %v703 = vpop.permute.xlu0 %702
    %704 = vrot.lane.b32.xlu0 %v576, 4
    %v705 = vpop.permute.xlu0 %704
    %706 = vrot.lane.b32.xlu0 %v578, 4
    %v707 = vpop.permute.xlu0 %706
    %708 = vrot.lane.b32.xlu0 %v581, 4
    %v709 = vpop.permute.xlu0 %708
    %710 = vrot.lane.b32.xlu0 %v583, 4
    %v711 = vpop.permute.xlu0 %710
    %712 = vrot.lane.b32.xlu0 %v586, 4
    %v713 = vpop.permute.xlu0 %712
    %714 = vrot.lane.b32.xlu0 %v588, 4
    %v715 = vpop.permute.xlu0 %714
    %716 = vrot.lane.b32.xlu0 %v591, 4
    %v717 = vpop.permute.xlu0 %716
    %718 = vrot.lane.b32.xlu0 %v593, 4
    %v719 = vpop.permute.xlu0 %718
    %720 = vrot.lane.b32.xlu0 %v596, 4
    %v721 = vpop.permute.xlu0 %720
    %722 = vrot.lane.b32.xlu0 %v598, 4
    %v723 = vpop.permute.xlu0 %722
    %724 = vrot.lane.b32.xlu0 %v601, 4
    %v725 = vpop.permute.xlu0 %724
    %726 = vrot.lane.b32.xlu0 %v603, 4
    %v727 = vpop.permute.xlu0 %726
    %728 = vrot.lane.b32.xlu0 %v606, 4
    %v729 = vpop.permute.xlu0 %728
    %730 = vrot.lane.b32.xlu0 %v608, 4
    %v731 = vpop.permute.xlu0 %730
    %732 = vrot.lane.b32.xlu0 %v611, 4
    %v733 = vpop.permute.xlu0 %732
    %734 = vrot.lane.b32.xlu0 %v613, 4
    %v735 = vpop.permute.xlu0 %734
    %vm797 = vcmask 1045504
    %v798 = vrot.slane 0.0, 2
    %v799 = vsel %vm797, %v798, %v798
    %v800 = vrot.slane %v336, 2
    %v801 = vrot.slane %v148, 2
    %v802 = vsel %vm797, %v800, %v801
    %v803 = vrot.slane %v368, 2
    %v804 = vsel %vm797, %v801, %v803
    %v805 = vrot.slane %v337, 2
    %v806 = vrot.slane %v151, 2
    %v807 = vsel %vm797, %v805, %v806
    %v808 = vrot.slane %v369, 2
    %v809 = vsel %vm797, %v806, %v808
    %v810 = vrot.slane %v338, 2
    %v811 = vrot.slane %v154, 2
    %v812 = vsel %vm797, %v810, %v811
    %v813 = vrot.slane %v370, 2
    %v814 = vsel %vm797, %v811, %v813
    %v815 = vrot.slane %v339, 2
    %v816 = vrot.slane %v157, 2
    %v817 = vsel %vm797, %v815, %v816
    %v818 = vrot.slane %v371, 2
    %v819 = vsel %vm797, %v816, %v818
    %v820 = vrot.slane %v340, 2
    %v821 = vrot.slane %v160, 2
    %v822 = vsel %vm797, %v820, %v821
    %v823 = vrot.slane %v372, 2
    %v824 = vsel %vm797, %v821, %v823
    %v825 = vrot.slane %v341, 2
    %v826 = vrot.slane %v163, 2
    %v827 = vsel %vm797, %v825, %v826
    %v828 = vrot.slane %v373, 2
    %v829 = vsel %vm797, %v826, %v828
    %v830 = vrot.slane %v342, 2
    %v831 = vrot.slane %v166, 2
    %v832 = vsel %vm797, %v830, %v831
    %v833 = vrot.slane %v374, 2
    %v834 = vsel %vm797, %v831, %v833
    %v835 = vrot.slane %v343, 2
    %v836 = vrot.slane %v169, 2
    %v837 = vsel %vm797, %v835, %v836
    %v838 = vrot.slane %v375, 2
    %v839 = vsel %vm797, %v836, %v838
    %v840 = vrot.slane %v344, 2
    %v841 = vrot.slane %v172, 2
    %v842 = vsel %vm797, %v840, %v841
    %v843 = vrot.slane %v376, 2
    %v844 = vsel %vm797, %v841, %v843
    %v845 = vrot.slane %v345, 2
    %v846 = vrot.slane %v175, 2
    %v847 = vsel %vm797, %v845, %v846
    %v848 = vrot.slane %v377, 2
    %v849 = vsel %vm797, %v846, %v848
    %v850 = vrot.slane %v346, 2
    %v851 = vrot.slane %v178, 2
    %v852 = vsel %vm797, %v850, %v851
    %v853 = vrot.slane %v378, 2
    %v854 = vsel %vm797, %v851, %v853
    %v855 = vrot.slane %v347, 2
    %v856 = vrot.slane %v181, 2
    %v857 = vsel %vm797, %v855, %v856
    %v858 = vrot.slane %v379, 2
    %v859 = vsel %vm797, %v856, %v858
    %v860 = vrot.slane %v348, 2
    %v861 = vrot.slane %v184, 2
    %v862 = vsel %vm797, %v860, %v861
    %v863 = vrot.slane %v380, 2
    %v864 = vsel %vm797, %v861, %v863
    %v865 = vrot.slane %v349, 2
    %v866 = vrot.slane %v187, 2
    %v867 = vsel %vm797, %v865, %v866
    %v868 = vrot.slane %v381, 2
    %v869 = vsel %vm797, %v866, %v868
    %v870 = vrot.slane %v350, 2
    %v871 = vrot.slane %v190, 2
    %v872 = vsel %vm797, %v870, %v871
    %v873 = vrot.slane %v382, 2
    %v874 = vsel %vm797, %v871, %v873
    %v875 = vrot.slane %v352, 2
    %v876 = vrot.slane %v196, 2
    %v877 = vsel %vm797, %v875, %v876
    %v878 = vrot.slane %v384, 2
    %v879 = vsel %vm797, %v876, %v878
    %v880 = vrot.slane %v353, 2
    %v881 = vrot.slane %v199, 2
    %v882 = vsel %vm797, %v880, %v881
    %v883 = vrot.slane %v385, 2
    %v884 = vsel %vm797, %v881, %v883
    %v885 = vrot.slane %v354, 2
    %v886 = vrot.slane %v202, 2
    %v887 = vsel %vm797, %v885, %v886
    %v888 = vrot.slane %v386, 2
    %v889 = vsel %vm797, %v886, %v888
    %v890 = vrot.slane %v355, 2
    %v891 = vrot.slane %v205, 2
    %v892 = vsel %vm797, %v890, %v891
    %v893 = vrot.slane %v387, 2
    %v894 = vsel %vm797, %v891, %v893
    %v895 = vrot.slane %v356, 2
    %v896 = vrot.slane %v208, 2
    %v897 = vsel %vm797, %v895, %v896
    %v898 = vrot.slane %v388, 2
    %v899 = vsel %vm797, %v896, %v898
    %v900 = vrot.slane %v357, 2
    %v901 = vrot.slane %v211, 2
    %v902 = vsel %vm797, %v900, %v901
    %v903 = vrot.slane %v389, 2
    %v904 = vsel %vm797, %v901, %v903
    %v905 = vrot.slane %v358, 2
    %v906 = vrot.slane %v214, 2
    %v907 = vsel %vm797, %v905, %v906
    %v908 = vrot.slane %v390, 2
    %v909 = vsel %vm797, %v906, %v908
    %v910 = vrot.slane %v359, 2
    %v911 = vrot.slane %v217, 2
    %v912 = vsel %vm797, %v910, %v911
    %v913 = vrot.slane %v391, 2
    %v914 = vsel %vm797, %v911, %v913
    %v915 = vrot.slane %v360, 2
    %v916 = vrot.slane %v220, 2
    %v917 = vsel %vm797, %v915, %v916
    %v918 = vrot.slane %v392, 2
    %v919 = vsel %vm797, %v916, %v918
    %v920 = vrot.slane %v361, 2
    %v921 = vrot.slane %v223, 2
    %v922 = vsel %vm797, %v920, %v921
    %v923 = vrot.slane %v393, 2
    %v924 = vsel %vm797, %v921, %v923
    %v925 = vrot.slane %v362, 2
    %v926 = vrot.slane %v226, 2
    %v927 = vsel %vm797, %v925, %v926
    %v928 = vrot.slane %v394, 2
    %v929 = vsel %vm797, %v926, %v928
    %v930 = vrot.slane %v363, 2
    %v931 = vrot.slane %v229, 2
    %v932 = vsel %vm797, %v930, %v931
    %v933 = vrot.slane %v395, 2
    %v934 = vsel %vm797, %v931, %v933
    %v935 = vrot.slane %v364, 2
    %v936 = vrot.slane %v232, 2
    %v937 = vsel %vm797, %v935, %v936
    %v938 = vrot.slane %v396, 2
    %v939 = vsel %vm797, %v936, %v938
    %v940 = vrot.slane %v365, 2
    %v941 = vrot.slane %v235, 2
    %v942 = vsel %vm797, %v940, %v941
    %v943 = vrot.slane %v397, 2
    %v944 = vsel %vm797, %v941, %v943
    %v945 = vrot.slane %v366, 2
    %v946 = vrot.slane %v238, 2
    %v947 = vsel %vm797, %v945, %v946
    %v948 = vrot.slane %v398, 2
    %v949 = vsel %vm797, %v946, %v948
    %950 = vrot.lane.b32.xlu0 %v799, 8
    %v951 = vpop.permute.xlu0 %950
    %952 = vrot.lane.b32.xlu0 %v802, 8
    %v953 = vpop.permute.xlu0 %952
    %954 = vrot.lane.b32.xlu0 %v804, 8
    %v955 = vpop.permute.xlu0 %954
    %956 = vrot.lane.b32.xlu0 %v807, 8
    %v957 = vpop.permute.xlu0 %956
    %958 = vrot.lane.b32.xlu0 %v809, 8
    %v959 = vpop.permute.xlu0 %958
    %960 = vrot.lane.b32.xlu0 %v812, 8
    %v961 = vpop.permute.xlu0 %960
    %962 = vrot.lane.b32.xlu0 %v814, 8
    %v963 = vpop.permute.xlu0 %962
    %964 = vrot.lane.b32.xlu0 %v817, 8
    %v965 = vpop.permute.xlu0 %964
    %966 = vrot.lane.b32.xlu0 %v819, 8
    %v967 = vpop.permute.xlu0 %966
    %968 = vrot.lane.b32.xlu0 %v822, 8
    %v969 = vpop.permute.xlu0 %968
    %970 = vrot.lane.b32.xlu0 %v824, 8
    %v971 = vpop.permute.xlu0 %970
    %972 = vrot.lane.b32.xlu0 %v827, 8
    %v973 = vpop.permute.xlu0 %972
    %974 = vrot.lane.b32.xlu0 %v829, 8
    %v975 = vpop.permute.xlu0 %974
    %976 = vrot.lane.b32.xlu0 %v832, 8
    %v977 = vpop.permute.xlu0 %976
    %978 = vrot.lane.b32.xlu0 %v834, 8
    %v979 = vpop.permute.xlu0 %978
    %980 = vrot.lane.b32.xlu0 %v837, 8
    %v981 = vpop.permute.xlu0 %980
    %982 = vrot.lane.b32.xlu0 %v839, 8
    %v983 = vpop.permute.xlu0 %982
    %984 = vrot.lane.b32.xlu0 %v842, 8
    %v985 = vpop.permute.xlu0 %984
    %986 = vrot.lane.b32.xlu0 %v844, 8
    %v987 = vpop.permute.xlu0 %986
    %988 = vrot.lane.b32.xlu0 %v847, 8
    %v989 = vpop.permute.xlu0 %988
    %990 = vrot.lane.b32.xlu0 %v849, 8
    %v991 = vpop.permute.xlu0 %990
    %992 = vrot.lane.b32.xlu0 %v852, 8
    %v993 = vpop.permute.xlu0 %992
    %994 = vrot.lane.b32.xlu0 %v854, 8
    %v995 = vpop.permute.xlu0 %994
    %996 = vrot.lane.b32.xlu0 %v857, 8
    %v997 = vpop.permute.xlu0 %996
    %998 = vrot.lane.b32.xlu0 %v859, 8
    %v999 = vpop.permute.xlu0 %998
    %1000 = vrot.lane.b32.xlu0 %v862, 8
    %v1001 = vpop.permute.xlu0 %1000
    %1002 = vrot.lane.b32.xlu0 %v864, 8
    %v1003 = vpop.permute.xlu0 %1002
    %1004 = vrot.lane.b32.xlu0 %v867, 8
    %v1005 = vpop.permute.xlu0 %1004
    %1006 = vrot.lane.b32.xlu0 %v869, 8
    %v1007 = vpop.permute.xlu0 %1006
    %1008 = vrot.lane.b32.xlu0 %v872, 8
    %v1009 = vpop.permute.xlu0 %1008
    %1010 = vrot.lane.b32.xlu0 %v874, 8
    %v1011 = vpop.permute.xlu0 %1010
    %1012 = vrot.lane.b32.xlu0 %v877, 8
    %v1013 = vpop.permute.xlu0 %1012
    %1014 = vrot.lane.b32.xlu0 %v879, 8
    %v1015 = vpop.permute.xlu0 %1014
    %1016 = vrot.lane.b32.xlu0 %v882, 8
    %v1017 = vpop.permute.xlu0 %1016
    %1018 = vrot.lane.b32.xlu0 %v884, 8
    %v1019 = vpop.permute.xlu0 %1018
    %1020 = vrot.lane.b32.xlu0 %v887, 8
    %v1021 = vpop.permute.xlu0 %1020
    %1022 = vrot.lane.b32.xlu0 %v889, 8
    %v1023 = vpop.permute.xlu0 %1022
    %1024 = vrot.lane.b32.xlu0 %v892, 8
    %v1025 = vpop.permute.xlu0 %1024
    %1026 = vrot.lane.b32.xlu0 %v894, 8
    %v1027 = vpop.permute.xlu0 %1026
    %1028 = vrot.lane.b32.xlu0 %v897, 8
    %v1029 = vpop.permute.xlu0 %1028
    %1030 = vrot.lane.b32.xlu0 %v899, 8
    %v1031 = vpop.permute.xlu0 %1030
    %1032 = vrot.lane.b32.xlu0 %v902, 8
    %v1033 = vpop.permute.xlu0 %1032
    %1034 = vrot.lane.b32.xlu0 %v904, 8
    %v1035 = vpop.permute.xlu0 %1034
    %1036 = vrot.lane.b32.xlu0 %v907, 8
    %v1037 = vpop.permute.xlu0 %1036
    %1038 = vrot.lane.b32.xlu0 %v909, 8
    %v1039 = vpop.permute.xlu0 %1038
    %1040 = vrot.lane.b32.xlu0 %v912, 8
    %v1041 = vpop.permute.xlu0 %1040
    %1042 = vrot.lane.b32.xlu0 %v914, 8
    %v1043 = vpop.permute.xlu0 %1042
    %1044 = vrot.lane.b32.xlu0 %v917, 8
    %v1045 = vpop.permute.xlu0 %1044
    %1046 = vrot.lane.b32.xlu0 %v919, 8
    %v1047 = vpop.permute.xlu0 %1046
    %1048 = vrot.lane.b32.xlu0 %v922, 8
    %v1049 = vpop.permute.xlu0 %1048
    %1050 = vrot.lane.b32.xlu0 %v924, 8
    %v1051 = vpop.permute.xlu0 %1050
    %1052 = vrot.lane.b32.xlu0 %v927, 8
    %v1053 = vpop.permute.xlu0 %1052
    %1054 = vrot.lane.b32.xlu0 %v929, 8
    %v1055 = vpop.permute.xlu0 %1054
    %1056 = vrot.lane.b32.xlu0 %v932, 8
    %v1057 = vpop.permute.xlu0 %1056
    %1058 = vrot.lane.b32.xlu0 %v934, 8
    %v1059 = vpop.permute.xlu0 %1058
    %1060 = vrot.lane.b32.xlu0 %v937, 8
    %v1061 = vpop.permute.xlu0 %1060
    %1062 = vrot.lane.b32.xlu0 %v939, 8
    %v1063 = vpop.permute.xlu0 %1062
    %1064 = vrot.lane.b32.xlu0 %v942, 8
    %v1065 = vpop.permute.xlu0 %1064
    %1066 = vrot.lane.b32.xlu0 %v944, 8
    %v1067 = vpop.permute.xlu0 %1066
    %1068 = vrot.lane.b32.xlu0 %v947, 8
    %v1069 = vpop.permute.xlu0 %1068
    %1070 = vrot.lane.b32.xlu0 %v949, 8
    %v1071 = vpop.permute.xlu0 %1070
    %1135 = vrot.lane.b32.xlu0 %v336, 12
    %v1136 = vpop.permute.xlu0 %1135
    %1137 = vrot.lane.b32.xlu0 %v148, 12
    %v1138 = vpop.permute.xlu0 %1137
    %1139 = vrot.lane.b32.xlu0 %v337, 12
    %v1140 = vpop.permute.xlu0 %1139
    %1141 = vrot.lane.b32.xlu0 %v151, 12
    %v1142 = vpop.permute.xlu0 %1141
    %1143 = vrot.lane.b32.xlu0 %v338, 12
    %v1144 = vpop.permute.xlu0 %1143
    %1145 = vrot.lane.b32.xlu0 %v154, 12
    %v1146 = vpop.permute.xlu0 %1145
    %1147 = vrot.lane.b32.xlu0 %v339, 12
    %v1148 = vpop.permute.xlu0 %1147
    %1149 = vrot.lane.b32.xlu0 %v157, 12
    %v1150 = vpop.permute.xlu0 %1149
    %1151 = vrot.lane.b32.xlu0 %v340, 12
    %v1152 = vpop.permute.xlu0 %1151
    %1153 = vrot.lane.b32.xlu0 %v160, 12
    %v1154 = vpop.permute.xlu0 %1153
    %1155 = vrot.lane.b32.xlu0 %v341, 12
    %v1156 = vpop.permute.xlu0 %1155
    %1157 = vrot.lane.b32.xlu0 %v163, 12
    %v1158 = vpop.permute.xlu0 %1157
    %1159 = vrot.lane.b32.xlu0 %v342, 12
    %v1160 = vpop.permute.xlu0 %1159
    %1161 = vrot.lane.b32.xlu0 %v166, 12
    %v1162 = vpop.permute.xlu0 %1161
    %1163 = vrot.lane.b32.xlu0 %v343, 12
    %v1164 = vpop.permute.xlu0 %1163
    %1165 = vrot.lane.b32.xlu0 %v169, 12
    %v1166 = vpop.permute.xlu0 %1165
    %1167 = vrot.lane.b32.xlu0 %v344, 12
    %v1168 = vpop.permute.xlu0 %1167
    %1169 = vrot.lane.b32.xlu0 %v172, 12
    %v1170 = vpop.permute.xlu0 %1169
    %1171 = vrot.lane.b32.xlu0 %v345, 12
    %v1172 = vpop.permute.xlu0 %1171
    %1173 = vrot.lane.b32.xlu0 %v175, 12
    %v1174 = vpop.permute.xlu0 %1173
    %1175 = vrot.lane.b32.xlu0 %v346, 12
    %v1176 = vpop.permute.xlu0 %1175
    %1177 = vrot.lane.b32.xlu0 %v178, 12
    %v1178 = vpop.permute.xlu0 %1177
    %1179 = vrot.lane.b32.xlu0 %v347, 12
    %v1180 = vpop.permute.xlu0 %1179
    %1181 = vrot.lane.b32.xlu0 %v181, 12
    %v1182 = vpop.permute.xlu0 %1181
    %1183 = vrot.lane.b32.xlu0 %v348, 12
    %v1184 = vpop.permute.xlu0 %1183
    %1185 = vrot.lane.b32.xlu0 %v184, 12
    %v1186 = vpop.permute.xlu0 %1185
    %1187 = vrot.lane.b32.xlu0 %v349, 12
    %v1188 = vpop.permute.xlu0 %1187
    %1189 = vrot.lane.b32.xlu0 %v187, 12
    %v1190 = vpop.permute.xlu0 %1189
    %1191 = vrot.lane.b32.xlu0 %v350, 12
    %v1192 = vpop.permute.xlu0 %1191
    %1193 = vrot.lane.b32.xlu0 %v190, 12
    %v1194 = vpop.permute.xlu0 %1193
    %1195 = vrot.lane.b32.xlu0 %v351, 12
    %v1196 = vpop.permute.xlu0 %1195
    %1197 = vrot.lane.b32.xlu0 %v193, 12
    %v1198 = vpop.permute.xlu0 %1197
    %1199 = vrot.lane.b32.xlu0 %v352, 12
    %v1200 = vpop.permute.xlu0 %1199
    %1201 = vrot.lane.b32.xlu0 %v196, 12
    %v1202 = vpop.permute.xlu0 %1201
    %1203 = vrot.lane.b32.xlu0 %v353, 12
    %v1204 = vpop.permute.xlu0 %1203
    %1205 = vrot.lane.b32.xlu0 %v199, 12
    %v1206 = vpop.permute.xlu0 %1205
    %1207 = vrot.lane.b32.xlu0 %v354, 12
    %v1208 = vpop.permute.xlu0 %1207
    %1209 = vrot.lane.b32.xlu0 %v202, 12
    %v1210 = vpop.permute.xlu0 %1209
    %1211 = vrot.lane.b32.xlu0 %v355, 12
    %v1212 = vpop.permute.xlu0 %1211
    %1213 = vrot.lane.b32.xlu0 %v205, 12
    %v1214 = vpop.permute.xlu0 %1213
    %1215 = vrot.lane.b32.xlu0 %v356, 12
    %v1216 = vpop.permute.xlu0 %1215
    %1217 = vrot.lane.b32.xlu0 %v208, 12
    %v1218 = vpop.permute.xlu0 %1217
    %1219 = vrot.lane.b32.xlu0 %v357, 12
    %v1220 = vpop.permute.xlu0 %1219
    %1221 = vrot.lane.b32.xlu0 %v211, 12
    %v1222 = vpop.permute.xlu0 %1221
    %1223 = vrot.lane.b32.xlu0 %v358, 12
    %v1224 = vpop.permute.xlu0 %1223
    %1225 = vrot.lane.b32.xlu0 %v214, 12
    %v1226 = vpop.permute.xlu0 %1225
    %1227 = vrot.lane.b32.xlu0 %v359, 12
    %v1228 = vpop.permute.xlu0 %1227
    %1229 = vrot.lane.b32.xlu0 %v217, 12
    %v1230 = vpop.permute.xlu0 %1229
    %1231 = vrot.lane.b32.xlu0 %v360, 12
    %v1232 = vpop.permute.xlu0 %1231
    %1233 = vrot.lane.b32.xlu0 %v220, 12
    %v1234 = vpop.permute.xlu0 %1233
    %1235 = vrot.lane.b32.xlu0 %v361, 12
    %v1236 = vpop.permute.xlu0 %1235
    %1237 = vrot.lane.b32.xlu0 %v223, 12
    %v1238 = vpop.permute.xlu0 %1237
    %1239 = vrot.lane.b32.xlu0 %v362, 12
    %v1240 = vpop.permute.xlu0 %1239
    %1241 = vrot.lane.b32.xlu0 %v226, 12
    %v1242 = vpop.permute.xlu0 %1241
    %1243 = vrot.lane.b32.xlu0 %v363, 12
    %v1244 = vpop.permute.xlu0 %1243
    %1245 = vrot.lane.b32.xlu0 %v229, 12
    %v1246 = vpop.permute.xlu0 %1245
    %1247 = vrot.lane.b32.xlu0 %v364, 12
    %v1248 = vpop.permute.xlu0 %1247
    %1249 = vrot.lane.b32.xlu0 %v232, 12
    %v1250 = vpop.permute.xlu0 %1249
    %1251 = vrot.lane.b32.xlu0 %v365, 12
    %v1252 = vpop.permute.xlu0 %1251
    %1253 = vrot.lane.b32.xlu0 %v235, 12
    %v1254 = vpop.permute.xlu0 %1253
    %1255 = vrot.lane.b32.xlu0 %v366, 12
    %v1256 = vpop.permute.xlu0 %1255
    %1257 = vrot.lane.b32.xlu0 %v238, 12
    %v1258 = vpop.permute.xlu0 %1257
    %1259 = vrot.lane.b32.xlu0 %v367, 12
    %v1260 = vpop.permute.xlu0 %1259
    %1261 = vrot.lane.b32.xlu0 %v241, 12
    %v1262 = vpop.permute.xlu0 %1261
    %v1329 = vrot.slane %v351, 1
    %v1330 = vrot.slane %v193, 1
    %v1331 = vsel %vm461, %v1329, %v1330
    %v1332 = vrot.slane %v383, 1
    %v1333 = vsel %vm461, %v1330, %v1332
    %v1334 = vrot.slane %v367, 1
    %v1335 = vrot.slane %v241, 1
    %v1336 = vsel %vm461, %v1334, %v1335
    %v1337 = vrot.slane %v399, 1
    %v1338 = vsel %vm461, %v1335, %v1337
    %1339 = vrot.lane.b32.xlu0 %v466, 16
    %v1340 = vpop.permute.xlu0 %1339
    %1341 = vrot.lane.b32.xlu0 %v468, 16
    %v1342 = vpop.permute.xlu0 %1341
    %1343 = vrot.lane.b32.xlu0 %v471, 16
    %v1344 = vpop.permute.xlu0 %1343
    %1345 = vrot.lane.b32.xlu0 %v473, 16
    %v1346 = vpop.permute.xlu0 %1345
    %1347 = vrot.lane.b32.xlu0 %v476, 16
    %v1348 = vpop.permute.xlu0 %1347
    %1349 = vrot.lane.b32.xlu0 %v478, 16
    %v1350 = vpop.permute.xlu0 %1349
    %1351 = vrot.lane.b32.xlu0 %v481, 16
    %v1352 = vpop.permute.xlu0 %1351
    %1353 = vrot.lane.b32.xlu0 %v483, 16
    %v1354 = vpop.permute.xlu0 %1353
    %1355 = vrot.lane.b32.xlu0 %v486, 16
    %v1356 = vpop.permute.xlu0 %1355
    %1357 = vrot.lane.b32.xlu0 %v488, 16
    %v1358 = vpop.permute.xlu0 %1357
    %1359 = vrot.lane.b32.xlu0 %v491, 16
    %v1360 = vpop.permute.xlu0 %1359
    %1361 = vrot.lane.b32.xlu0 %v493, 16
    %v1362 = vpop.permute.xlu0 %1361
    %1363 = vrot.lane.b32.xlu0 %v496, 16
    %v1364 = vpop.permute.xlu0 %1363
    %1365 = vrot.lane.b32.xlu0 %v498, 16
    %v1366 = vpop.permute.xlu0 %1365
    %1367 = vrot.lane.b32.xlu0 %v501, 16
    %v1368 = vpop.permute.xlu0 %1367
    %1369 = vrot.lane.b32.xlu0 %v503, 16
    %v1370 = vpop.permute.xlu0 %1369
    %1371 = vrot.lane.b32.xlu0 %v506, 16
    %v1372 = vpop.permute.xlu0 %1371
    %1373 = vrot.lane.b32.xlu0 %v508, 16
    %v1374 = vpop.permute.xlu0 %1373
    %1375 = vrot.lane.b32.xlu0 %v511, 16
    %v1376 = vpop.permute.xlu0 %1375
    %1377 = vrot.lane.b32.xlu0 %v513, 16
    %v1378 = vpop.permute.xlu0 %1377
    %1379 = vrot.lane.b32.xlu0 %v516, 16
    %v1380 = vpop.permute.xlu0 %1379
    %1381 = vrot.lane.b32.xlu0 %v518, 16
    %v1382 = vpop.permute.xlu0 %1381
    %1383 = vrot.lane.b32.xlu0 %v521, 16
    %v1384 = vpop.permute.xlu0 %1383
    %1385 = vrot.lane.b32.xlu0 %v523, 16
    %v1386 = vpop.permute.xlu0 %1385
    %1387 = vrot.lane.b32.xlu0 %v526, 16
    %v1388 = vpop.permute.xlu0 %1387
    %1389 = vrot.lane.b32.xlu0 %v528, 16
    %v1390 = vpop.permute.xlu0 %1389
    %1391 = vrot.lane.b32.xlu0 %v531, 16
    %v1392 = vpop.permute.xlu0 %1391
    %1393 = vrot.lane.b32.xlu0 %v533, 16
    %v1394 = vpop.permute.xlu0 %1393
    %1395 = vrot.lane.b32.xlu0 %v536, 16
    %v1396 = vpop.permute.xlu0 %1395
    %1397 = vrot.lane.b32.xlu0 %v538, 16
    %v1398 = vpop.permute.xlu0 %1397
    %1399 = vrot.lane.b32.xlu0 %v1331, 16
    %v1400 = vpop.permute.xlu0 %1399
    %1401 = vrot.lane.b32.xlu0 %v1333, 16
    %v1402 = vpop.permute.xlu0 %1401
    %1403 = vrot.lane.b32.xlu0 %v541, 16
    %v1404 = vpop.permute.xlu0 %1403
    %1405 = vrot.lane.b32.xlu0 %v543, 16
    %v1406 = vpop.permute.xlu0 %1405
    %1407 = vrot.lane.b32.xlu0 %v546, 16
    %v1408 = vpop.permute.xlu0 %1407
    %1409 = vrot.lane.b32.xlu0 %v548, 16
    %v1410 = vpop.permute.xlu0 %1409
    %1411 = vrot.lane.b32.xlu0 %v551, 16
    %v1412 = vpop.permute.xlu0 %1411
    %1413 = vrot.lane.b32.xlu0 %v553, 16
    %v1414 = vpop.permute.xlu0 %1413
    %1415 = vrot.lane.b32.xlu0 %v556, 16
    %v1416 = vpop.permute.xlu0 %1415
    %1417 = vrot.lane.b32.xlu0 %v558, 16
    %v1418 = vpop.permute.xlu0 %1417
    %1419 = vrot.lane.b32.xlu0 %v561, 16
    %v1420 = vpop.permute.xlu0 %1419
    %1421 = vrot.lane.b32.xlu0 %v563, 16
    %v1422 = vpop.permute.xlu0 %1421
    %1423 = vrot.lane.b32.xlu0 %v566, 16
    %v1424 = vpop.permute.xlu0 %1423
    %1425 = vrot.lane.b32.xlu0 %v568, 16
    %v1426 = vpop.permute.xlu0 %1425
    %1427 = vrot.lane.b32.xlu0 %v571, 16
    %v1428 = vpop.permute.xlu0 %1427
    %1429 = vrot.lane.b32.xlu0 %v573, 16
    %v1430 = vpop.permute.xlu0 %1429
    %1431 = vrot.lane.b32.xlu0 %v576, 16
    %v1432 = vpop.permute.xlu0 %1431
    %1433 = vrot.lane.b32.xlu0 %v578, 16
    %v1434 = vpop.permute.xlu0 %1433
    %1435 = vrot.lane.b32.xlu0 %v581, 16
    %v1436 = vpop.permute.xlu0 %1435
    %1437 = vrot.lane.b32.xlu0 %v583, 16
    %v1438 = vpop.permute.xlu0 %1437
    %1439 = vrot.lane.b32.xlu0 %v586, 16
    %v1440 = vpop.permute.xlu0 %1439
    %1441 = vrot.lane.b32.xlu0 %v588, 16
    %v1442 = vpop.permute.xlu0 %1441
    %1443 = vrot.lane.b32.xlu0 %v591, 16
    %v1444 = vpop.permute.xlu0 %1443
    %1445 = vrot.lane.b32.xlu0 %v593, 16
    %v1446 = vpop.permute.xlu0 %1445
    %1447 = vrot.lane.b32.xlu0 %v596, 16
    %v1448 = vpop.permute.xlu0 %1447
    %1449 = vrot.lane.b32.xlu0 %v598, 16
    %v1450 = vpop.permute.xlu0 %1449
    %1451 = vrot.lane.b32.xlu0 %v601, 16
    %v1452 = vpop.permute.xlu0 %1451
    %1453 = vrot.lane.b32.xlu0 %v603, 16
    %v1454 = vpop.permute.xlu0 %1453
    %1455 = vrot.lane.b32.xlu0 %v606, 16
    %v1456 = vpop.permute.xlu0 %1455
    %1457 = vrot.lane.b32.xlu0 %v608, 16
    %v1458 = vpop.permute.xlu0 %1457
    %1459 = vrot.lane.b32.xlu0 %v611, 16
    %v1460 = vpop.permute.xlu0 %1459
    %1461 = vrot.lane.b32.xlu0 %v613, 16
    %v1462 = vpop.permute.xlu0 %1461
    %1463 = vrot.lane.b32.xlu0 %v1336, 16
    %v1464 = vpop.permute.xlu0 %1463
    %1465 = vrot.lane.b32.xlu0 %v1338, 16
    %v1466 = vpop.permute.xlu0 %1465
    %v1531 = vrot.slane %v351, 2
    %v1532 = vrot.slane %v193, 2
    %v1533 = vsel %vm797, %v1531, %v1532
    %v1534 = vrot.slane %v383, 2
    %v1535 = vsel %vm797, %v1532, %v1534
    %v1536 = vrot.slane %v367, 2
    %v1537 = vrot.slane %v241, 2
    %v1538 = vsel %vm797, %v1536, %v1537
    %v1539 = vrot.slane %v399, 2
    %v1540 = vsel %vm797, %v1537, %v1539
    %1541 = vrot.lane.b32.xlu0 %v802, 20
    %v1542 = vpop.permute.xlu0 %1541
    %1543 = vrot.lane.b32.xlu0 %v804, 20
    %v1544 = vpop.permute.xlu0 %1543
    %1545 = vrot.lane.b32.xlu0 %v807, 20
    %v1546 = vpop.permute.xlu0 %1545
    %1547 = vrot.lane.b32.xlu0 %v809, 20
    %v1548 = vpop.permute.xlu0 %1547
    %1549 = vrot.lane.b32.xlu0 %v812, 20
    %v1550 = vpop.permute.xlu0 %1549
    %1551 = vrot.lane.b32.xlu0 %v814, 20
    %v1552 = vpop.permute.xlu0 %1551
    %1553 = vrot.lane.b32.xlu0 %v817, 20
    %v1554 = vpop.permute.xlu0 %1553
    %1555 = vrot.lane.b32.xlu0 %v819, 20
    %v1556 = vpop.permute.xlu0 %1555
    %1557 = vrot.lane.b32.xlu0 %v822, 20
    %v1558 = vpop.permute.xlu0 %1557
    %1559 = vrot.lane.b32.xlu0 %v824, 20
    %v1560 = vpop.permute.xlu0 %1559
    %1561 = vrot.lane.b32.xlu0 %v827, 20
    %v1562 = vpop.permute.xlu0 %1561
    %1563 = vrot.lane.b32.xlu0 %v829, 20
    %v1564 = vpop.permute.xlu0 %1563
    %1565 = vrot.lane.b32.xlu0 %v832, 20
    %v1566 = vpop.permute.xlu0 %1565
    %1567 = vrot.lane.b32.xlu0 %v834, 20
    %v1568 = vpop.permute.xlu0 %1567
    %1569 = vrot.lane.b32.xlu0 %v837, 20
    %v1570 = vpop.permute.xlu0 %1569
    %1571 = vrot.lane.b32.xlu0 %v839, 20
    %v1572 = vpop.permute.xlu0 %1571
    %1573 = vrot.lane.b32.xlu0 %v842, 20
    %v1574 = vpop.permute.xlu0 %1573
    %1575 = vrot.lane.b32.xlu0 %v844, 20
    %v1576 = vpop.permute.xlu0 %1575
    %1577 = vrot.lane.b32.xlu0 %v847, 20
    %v1578 = vpop.permute.xlu0 %1577
    %1579 = vrot.lane.b32.xlu0 %v849, 20
    %v1580 = vpop.permute.xlu0 %1579
    %1581 = vrot.lane.b32.xlu0 %v852, 20
    %v1582 = vpop.permute.xlu0 %1581
    %1583 = vrot.lane.b32.xlu0 %v854, 20
    %v1584 = vpop.permute.xlu0 %1583
    %1585 = vrot.lane.b32.xlu0 %v857, 20
    %v1586 = vpop.permute.xlu0 %1585
    %1587 = vrot.lane.b32.xlu0 %v859, 20
    %v1588 = vpop.permute.xlu0 %1587
    %1589 = vrot.lane.b32.xlu0 %v862, 20
    %v1590 = vpop.permute.xlu0 %1589
    %1591 = vrot.lane.b32.xlu0 %v864, 20
    %v1592 = vpop.permute.xlu0 %1591
    %1593 = vrot.lane.b32.xlu0 %v867, 20
    %v1594 = vpop.permute.xlu0 %1593
    %1595 = vrot.lane.b32.xlu0 %v869, 20
    %v1596 = vpop.permute.xlu0 %1595
    %1597 = vrot.lane.b32.xlu0 %v872, 20
    %v1598 = vpop.permute.xlu0 %1597
    %1599 = vrot.lane.b32.xlu0 %v874, 20
    %v1600 = vpop.permute.xlu0 %1599
    %1601 = vrot.lane.b32.xlu0 %v1533, 20
    %v1602 = vpop.permute.xlu0 %1601
    %1603 = vrot.lane.b32.xlu0 %v1535, 20
    %v1604 = vpop.permute.xlu0 %1603
    %1605 = vrot.lane.b32.xlu0 %v877, 20
    %v1606 = vpop.permute.xlu0 %1605
    %1607 = vrot.lane.b32.xlu0 %v879, 20
    %v1608 = vpop.permute.xlu0 %1607
    %1609 = vrot.lane.b32.xlu0 %v882, 20
    %v1610 = vpop.permute.xlu0 %1609
    %1611 = vrot.lane.b32.xlu0 %v884, 20
    %v1612 = vpop.permute.xlu0 %1611
    %1613 = vrot.lane.b32.xlu0 %v887, 20
    %v1614 = vpop.permute.xlu0 %1613
    %1615 = vrot.lane.b32.xlu0 %v889, 20
    %v1616 = vpop.permute.xlu0 %1615
    %1617 = vrot.lane.b32.xlu0 %v892, 20
    %v1618 = vpop.permute.xlu0 %1617
    %1619 = vrot.lane.b32.xlu0 %v894, 20
    %v1620 = vpop.permute.xlu0 %1619
    %1621 = vrot.lane.b32.xlu0 %v897, 20
    %v1622 = vpop.permute.xlu0 %1621
    %1623 = vrot.lane.b32.xlu0 %v899, 20
    %v1624 = vpop.permute.xlu0 %1623
    %1625 = vrot.lane.b32.xlu0 %v902, 20
    %v1626 = vpop.permute.xlu0 %1625
    %1627 = vrot.lane.b32.xlu0 %v904, 20
    %v1628 = vpop.permute.xlu0 %1627
    %1629 = vrot.lane.b32.xlu0 %v907, 20
    %v1630 = vpop.permute.xlu0 %1629
    %1631 = vrot.lane.b32.xlu0 %v909, 20
    %v1632 = vpop.permute.xlu0 %1631
    %1633 = vrot.lane.b32.xlu0 %v912, 20
    %v1634 = vpop.permute.xlu0 %1633
    %1635 = vrot.lane.b32.xlu0 %v914, 20
    %v1636 = vpop.permute.xlu0 %1635
    %1637 = vrot.lane.b32.xlu0 %v917, 20
    %v1638 = vpop.permute.xlu0 %1637
    %1639 = vrot.lane.b32.xlu0 %v919, 20
    %v1640 = vpop.permute.xlu0 %1639
    %1641 = vrot.lane.b32.xlu0 %v922, 20
    %v1642 = vpop.permute.xlu0 %1641
    %1643 = vrot.lane.b32.xlu0 %v924, 20
    %v1644 = vpop.permute.xlu0 %1643
    %1645 = vrot.lane.b32.xlu0 %v927, 20
    %v1646 = vpop.permute.xlu0 %1645
    %1647 = vrot.lane.b32.xlu0 %v929, 20
    %v1648 = vpop.permute.xlu0 %1647
    %1649 = vrot.lane.b32.xlu0 %v932, 20
    %v1650 = vpop.permute.xlu0 %1649
    %1651 = vrot.lane.b32.xlu0 %v934, 20
    %v1652 = vpop.permute.xlu0 %1651
    %1653 = vrot.lane.b32.xlu0 %v937, 20
    %v1654 = vpop.permute.xlu0 %1653
    %1655 = vrot.lane.b32.xlu0 %v939, 20
    %v1656 = vpop.permute.xlu0 %1655
    %1657 = vrot.lane.b32.xlu0 %v942, 20
    %v1658 = vpop.permute.xlu0 %1657
    %1659 = vrot.lane.b32.xlu0 %v944, 20
    %v1660 = vpop.permute.xlu0 %1659
    %1661 = vrot.lane.b32.xlu0 %v947, 20
    %v1662 = vpop.permute.xlu0 %1661
    %1663 = vrot.lane.b32.xlu0 %v949, 20
    %v1664 = vpop.permute.xlu0 %1663
    %1665 = vrot.lane.b32.xlu0 %v1538, 20
    %v1666 = vpop.permute.xlu0 %1665
    %1667 = vrot.lane.b32.xlu0 %v1540, 20
    %v1668 = vpop.permute.xlu0 %1667
    %1733 = vrot.lane.b32.xlu0 %v337, 24
    %v1734 = vpop.permute.xlu0 %1733
    %1735 = vrot.lane.b32.xlu0 %v151, 24
    %v1736 = vpop.permute.xlu0 %1735
    %1737 = vrot.lane.b32.xlu0 %v338, 24
    %v1738 = vpop.permute.xlu0 %1737
    %1739 = vrot.lane.b32.xlu0 %v154, 24
    %v1740 = vpop.permute.xlu0 %1739
    %1741 = vrot.lane.b32.xlu0 %v339, 24
    %v1742 = vpop.permute.xlu0 %1741
    %1743 = vrot.lane.b32.xlu0 %v157, 24
    %v1744 = vpop.permute.xlu0 %1743
    %1745 = vrot.lane.b32.xlu0 %v340, 24
    %v1746 = vpop.permute.xlu0 %1745
    %1747 = vrot.lane.b32.xlu0 %v160, 24
    %v1748 = vpop.permute.xlu0 %1747
    %1749 = vrot.lane.b32.xlu0 %v341, 24
    %v1750 = vpop.permute.xlu0 %1749
    %1751 = vrot.lane.b32.xlu0 %v163, 24
    %v1752 = vpop.permute.xlu0 %1751
    %1753 = vrot.lane.b32.xlu0 %v342, 24
    %v1754 = vpop.permute.xlu0 %1753
    %1755 = vrot.lane.b32.xlu0 %v166, 24
    %v1756 = vpop.permute.xlu0 %1755
    %1757 = vrot.lane.b32.xlu0 %v343, 24
    %v1758 = vpop.permute.xlu0 %1757
    %1759 = vrot.lane.b32.xlu0 %v169, 24
    %v1760 = vpop.permute.xlu0 %1759
    %1761 = vrot.lane.b32.xlu0 %v344, 24
    %v1762 = vpop.permute.xlu0 %1761
    %1763 = vrot.lane.b32.xlu0 %v172, 24
    %v1764 = vpop.permute.xlu0 %1763
    %1765 = vrot.lane.b32.xlu0 %v345, 24
    %v1766 = vpop.permute.xlu0 %1765
    %1767 = vrot.lane.b32.xlu0 %v175, 24
    %v1768 = vpop.permute.xlu0 %1767
    %1769 = vrot.lane.b32.xlu0 %v346, 24
    %v1770 = vpop.permute.xlu0 %1769
    %1771 = vrot.lane.b32.xlu0 %v178, 24
    %v1772 = vpop.permute.xlu0 %1771
    %1773 = vrot.lane.b32.xlu0 %v347, 24
    %v1774 = vpop.permute.xlu0 %1773
    %1775 = vrot.lane.b32.xlu0 %v181, 24
    %v1776 = vpop.permute.xlu0 %1775
    %1777 = vrot.lane.b32.xlu0 %v348, 24
    %v1778 = vpop.permute.xlu0 %1777
    %1779 = vrot.lane.b32.xlu0 %v184, 24
    %v1780 = vpop.permute.xlu0 %1779
    %1781 = vrot.lane.b32.xlu0 %v349, 24
    %v1782 = vpop.permute.xlu0 %1781
    %1783 = vrot.lane.b32.xlu0 %v187, 24
    %v1784 = vpop.permute.xlu0 %1783
    %1785 = vrot.lane.b32.xlu0 %v350, 24
    %v1786 = vpop.permute.xlu0 %1785
    %1787 = vrot.lane.b32.xlu0 %v190, 24
    %v1788 = vpop.permute.xlu0 %1787
    %1789 = vrot.lane.b32.xlu0 %v351, 24
    %v1790 = vpop.permute.xlu0 %1789
    %1791 = vrot.lane.b32.xlu0 %v193, 24
    %v1792 = vpop.permute.xlu0 %1791
    %1793 = vrot.lane.b32.xlu0 0.0, 24
    %v1794 = vpop.permute.xlu0 %1793
    %1795 = vrot.lane.b32.xlu0 %v353, 24
    %v1796 = vpop.permute.xlu0 %1795
    %1797 = vrot.lane.b32.xlu0 %v199, 24
    %v1798 = vpop.permute.xlu0 %1797
    %1799 = vrot.lane.b32.xlu0 %v354, 24
    %v1800 = vpop.permute.xlu0 %1799
    %1801 = vrot.lane.b32.xlu0 %v202, 24
    %v1802 = vpop.permute.xlu0 %1801
    %1803 = vrot.lane.b32.xlu0 %v355, 24
    %v1804 = vpop.permute.xlu0 %1803
    %1805 = vrot.lane.b32.xlu0 %v205, 24
    %v1806 = vpop.permute.xlu0 %1805
    %1807 = vrot.lane.b32.xlu0 %v356, 24
    %v1808 = vpop.permute.xlu0 %1807
    %1809 = vrot.lane.b32.xlu0 %v208, 24
    %v1810 = vpop.permute.xlu0 %1809
    %1811 = vrot.lane.b32.xlu0 %v357, 24
    %v1812 = vpop.permute.xlu0 %1811
    %1813 = vrot.lane.b32.xlu0 %v211, 24
    %v1814 = vpop.permute.xlu0 %1813
    %1815 = vrot.lane.b32.xlu0 %v358, 24
    %v1816 = vpop.permute.xlu0 %1815
    %1817 = vrot.lane.b32.xlu0 %v214, 24
    %v1818 = vpop.permute.xlu0 %1817
    %1819 = vrot.lane.b32.xlu0 %v359, 24
    %v1820 = vpop.permute.xlu0 %1819
    %1821 = vrot.lane.b32.xlu0 %v217, 24
    %v1822 = vpop.permute.xlu0 %1821
    %1823 = vrot.lane.b32.xlu0 %v360, 24
    %v1824 = vpop.permute.xlu0 %1823
    %1825 = vrot.lane.b32.xlu0 %v220, 24
    %v1826 = vpop.permute.xlu0 %1825
    %1827 = vrot.lane.b32.xlu0 %v361, 24
    %v1828 = vpop.permute.xlu0 %1827
    %1829 = vrot.lane.b32.xlu0 %v223, 24
    %v1830 = vpop.permute.xlu0 %1829
    %1831 = vrot.lane.b32.xlu0 %v362, 24
    %v1832 = vpop.permute.xlu0 %1831
    %1833 = vrot.lane.b32.xlu0 %v226, 24
    %v1834 = vpop.permute.xlu0 %1833
    %1835 = vrot.lane.b32.xlu0 %v363, 24
    %v1836 = vpop.permute.xlu0 %1835
    %1837 = vrot.lane.b32.xlu0 %v229, 24
    %v1838 = vpop.permute.xlu0 %1837
    %1839 = vrot.lane.b32.xlu0 %v364, 24
    %v1840 = vpop.permute.xlu0 %1839
    %1841 = vrot.lane.b32.xlu0 %v232, 24
    %v1842 = vpop.permute.xlu0 %1841
    %1843 = vrot.lane.b32.xlu0 %v365, 24
    %v1844 = vpop.permute.xlu0 %1843
    %1845 = vrot.lane.b32.xlu0 %v235, 24
    %v1846 = vpop.permute.xlu0 %1845
    %1847 = vrot.lane.b32.xlu0 %v366, 24
    %v1848 = vpop.permute.xlu0 %1847
    %1849 = vrot.lane.b32.xlu0 %v238, 24
    %v1850 = vpop.permute.xlu0 %1849
    %1851 = vrot.lane.b32.xlu0 %v367, 24
    %v1852 = vpop.permute.xlu0 %1851
    %1853 = vrot.lane.b32.xlu0 %v241, 24
    %v1854 = vpop.permute.xlu0 %1853
    %1916 = vrot.lane.b32.xlu0 %v471, 28
    %v1917 = vpop.permute.xlu0 %1916
    %1918 = vrot.lane.b32.xlu0 %v473, 28
    %v1919 = vpop.permute.xlu0 %1918
    %1920 = vrot.lane.b32.xlu0 %v476, 28
    %v1921 = vpop.permute.xlu0 %1920
    %1922 = vrot.lane.b32.xlu0 %v478, 28
    %v1923 = vpop.permute.xlu0 %1922
    %1924 = vrot.lane.b32.xlu0 %v481, 28
    %v1925 = vpop.permute.xlu0 %1924
    %1926 = vrot.lane.b32.xlu0 %v483, 28
    %v1927 = vpop.permute.xlu0 %1926
    %1928 = vrot.lane.b32.xlu0 %v486, 28
    %v1929 = vpop.permute.xlu0 %1928
    %1930 = vrot.lane.b32.xlu0 %v488, 28
    %v1931 = vpop.permute.xlu0 %1930
    %1932 = vrot.lane.b32.xlu0 %v491, 28
    %v1933 = vpop.permute.xlu0 %1932
    %1934 = vrot.lane.b32.xlu0 %v493, 28
    %v1935 = vpop.permute.xlu0 %1934
    %1936 = vrot.lane.b32.xlu0 %v496, 28
    %v1937 = vpop.permute.xlu0 %1936
    %1938 = vrot.lane.b32.xlu0 %v498, 28
    %v1939 = vpop.permute.xlu0 %1938
    %1940 = vrot.lane.b32.xlu0 %v501, 28
    %v1941 = vpop.permute.xlu0 %1940
    %1942 = vrot.lane.b32.xlu0 %v503, 28
    %v1943 = vpop.permute.xlu0 %1942
    %1944 = vrot.lane.b32.xlu0 %v506, 28
    %v1945 = vpop.permute.xlu0 %1944
    %1946 = vrot.lane.b32.xlu0 %v508, 28
    %v1947 = vpop.permute.xlu0 %1946
    %1948 = vrot.lane.b32.xlu0 %v511, 28
    %v1949 = vpop.permute.xlu0 %1948
    %1950 = vrot.lane.b32.xlu0 %v513, 28
    %v1951 = vpop.permute.xlu0 %1950
    %1952 = vrot.lane.b32.xlu0 %v516, 28
    %v1953 = vpop.permute.xlu0 %1952
    %1954 = vrot.lane.b32.xlu0 %v518, 28
    %v1955 = vpop.permute.xlu0 %1954
    %1956 = vrot.lane.b32.xlu0 %v521, 28
    %v1957 = vpop.permute.xlu0 %1956
    %1958 = vrot.lane.b32.xlu0 %v523, 28
    %v1959 = vpop.permute.xlu0 %1958
    %1960 = vrot.lane.b32.xlu0 %v526, 28
    %v1961 = vpop.permute.xlu0 %1960
    %1962 = vrot.lane.b32.xlu0 %v528, 28
    %v1963 = vpop.permute.xlu0 %1962
    %1964 = vrot.lane.b32.xlu0 %v531, 28
    %v1965 = vpop.permute.xlu0 %1964
    %1966 = vrot.lane.b32.xlu0 %v533, 28
    %v1967 = vpop.permute.xlu0 %1966
    %1968 = vrot.lane.b32.xlu0 %v536, 28
    %v1969 = vpop.permute.xlu0 %1968
    %1970 = vrot.lane.b32.xlu0 %v538, 28
    %v1971 = vpop.permute.xlu0 %1970
    %1972 = vrot.lane.b32.xlu0 %v1331, 28
    %v1973 = vpop.permute.xlu0 %1972
    %1974 = vrot.lane.b32.xlu0 %v1333, 28
    %v1975 = vpop.permute.xlu0 %1974
    %1976 = vrot.lane.b32.xlu0 %v463, 28
    %v1977 = vpop.permute.xlu0 %1976
    %1978 = vrot.lane.b32.xlu0 %v546, 28
    %v1979 = vpop.permute.xlu0 %1978
    %1980 = vrot.lane.b32.xlu0 %v548, 28
    %v1981 = vpop.permute.xlu0 %1980
    %1982 = vrot.lane.b32.xlu0 %v551, 28
    %v1983 = vpop.permute.xlu0 %1982
    %1984 = vrot.lane.b32.xlu0 %v553, 28
    %v1985 = vpop.permute.xlu0 %1984
    %1986 = vrot.lane.b32.xlu0 %v556, 28
    %v1987 = vpop.permute.xlu0 %1986
    %1988 = vrot.lane.b32.xlu0 %v558, 28
    %v1989 = vpop.permute.xlu0 %1988
    %1990 = vrot.lane.b32.xlu0 %v561, 28
    %v1991 = vpop.permute.xlu0 %1990
    %1992 = vrot.lane.b32.xlu0 %v563, 28
    %v1993 = vpop.permute.xlu0 %1992
    %1994 = vrot.lane.b32.xlu0 %v566, 28
    %v1995 = vpop.permute.xlu0 %1994
    %1996 = vrot.lane.b32.xlu0 %v568, 28
    %v1997 = vpop.permute.xlu0 %1996
    %1998 = vrot.lane.b32.xlu0 %v571, 28
    %v1999 = vpop.permute.xlu0 %1998
    %2000 = vrot.lane.b32.xlu0 %v573, 28
    %v2001 = vpop.permute.xlu0 %2000
    %2002 = vrot.lane.b32.xlu0 %v576, 28
    %v2003 = vpop.permute.xlu0 %2002
    %2004 = vrot.lane.b32.xlu0 %v578, 28
    %v2005 = vpop.permute.xlu0 %2004
    %2006 = vrot.lane.b32.xlu0 %v581, 28
    %v2007 = vpop.permute.xlu0 %2006
    %2008 = vrot.lane.b32.xlu0 %v583, 28
    %v2009 = vpop.permute.xlu0 %2008
    %2010 = vrot.lane.b32.xlu0 %v586, 28
    %v2011 = vpop.permute.xlu0 %2010
    %2012 = vrot.lane.b32.xlu0 %v588, 28
    %v2013 = vpop.permute.xlu0 %2012
    %2014 = vrot.lane.b32.xlu0 %v591, 28
    %v2015 = vpop.permute.xlu0 %2014
    %2016 = vrot.lane.b32.xlu0 %v593, 28
    %v2017 = vpop.permute.xlu0 %2016
    %2018 = vrot.lane.b32.xlu0 %v596, 28
    %v2019 = vpop.permute.xlu0 %2018
    %2020 = vrot.lane.b32.xlu0 %v598, 28
    %v2021 = vpop.permute.xlu0 %2020
    %2022 = vrot.lane.b32.xlu0 %v601, 28
    %v2023 = vpop.permute.xlu0 %2022
    %2024 = vrot.lane.b32.xlu0 %v603, 28
    %v2025 = vpop.permute.xlu0 %2024
    %2026 = vrot.lane.b32.xlu0 %v606, 28
    %v2027 = vpop.permute.xlu0 %2026
    %2028 = vrot.lane.b32.xlu0 %v608, 28
    %v2029 = vpop.permute.xlu0 %2028
    %2030 = vrot.lane.b32.xlu0 %v611, 28
    %v2031 = vpop.permute.xlu0 %2030
    %2032 = vrot.lane.b32.xlu0 %v613, 28
    %v2033 = vpop.permute.xlu0 %2032
    %2034 = vrot.lane.b32.xlu0 %v1336, 28
    %v2035 = vpop.permute.xlu0 %2034
    %2036 = vrot.lane.b32.xlu0 %v1338, 28
    %v2037 = vpop.permute.xlu0 %2036
    %2099 = vrot.lane.b32.xlu0 %v807, 32
    %v2100 = vpop.permute.xlu0 %2099
    %2101 = vrot.lane.b32.xlu0 %v809, 32
    %v2102 = vpop.permute.xlu0 %2101
    %2103 = vrot.lane.b32.xlu0 %v812, 32
    %v2104 = vpop.permute.xlu0 %2103
    %2105 = vrot.lane.b32.xlu0 %v814, 32
    %v2106 = vpop.permute.xlu0 %2105
    %2107 = vrot.lane.b32.xlu0 %v817, 32
    %v2108 = vpop.permute.xlu0 %2107
    %2109 = vrot.lane.b32.xlu0 %v819, 32
    %v2110 = vpop.permute.xlu0 %2109
    %2111 = vrot.lane.b32.xlu0 %v822, 32
    %v2112 = vpop.permute.xlu0 %2111
    %2113 = vrot.lane.b32.xlu0 %v824, 32
    %v2114 = vpop.permute.xlu0 %2113
    %2115 = vrot.lane.b32.xlu0 %v827, 32
    %v2116 = vpop.permute.xlu0 %2115
    %2117 = vrot.lane.b32.xlu0 %v829, 32
    %v2118 = vpop.permute.xlu0 %2117
    %2119 = vrot.lane.b32.xlu0 %v832, 32
    %v2120 = vpop.permute.xlu0 %2119
    %2121 = vrot.lane.b32.xlu0 %v834, 32
    %v2122 = vpop.permute.xlu0 %2121
    %2123 = vrot.lane.b32.xlu0 %v837, 32
    %v2124 = vpop.permute.xlu0 %2123
    %2125 = vrot.lane.b32.xlu0 %v839, 32
    %v2126 = vpop.permute.xlu0 %2125
    %2127 = vrot.lane.b32.xlu0 %v842, 32
    %v2128 = vpop.permute.xlu0 %2127
    %2129 = vrot.lane.b32.xlu0 %v844, 32
    %v2130 = vpop.permute.xlu0 %2129
    %2131 = vrot.lane.b32.xlu0 %v847, 32
    %v2132 = vpop.permute.xlu0 %2131
    %2133 = vrot.lane.b32.xlu0 %v849, 32
    %v2134 = vpop.permute.xlu0 %2133
    %2135 = vrot.lane.b32.xlu0 %v852, 32
    %v2136 = vpop.permute.xlu0 %2135
    %2137 = vrot.lane.b32.xlu0 %v854, 32
    %v2138 = vpop.permute.xlu0 %2137
    %2139 = vrot.lane.b32.xlu0 %v857, 32
    %v2140 = vpop.permute.xlu0 %2139
    %2141 = vrot.lane.b32.xlu0 %v859, 32
    %v2142 = vpop.permute.xlu0 %2141
    %2143 = vrot.lane.b32.xlu0 %v862, 32
    %v2144 = vpop.permute.xlu0 %2143
    %2145 = vrot.lane.b32.xlu0 %v864, 32
    %v2146 = vpop.permute.xlu0 %2145
    %2147 = vrot.lane.b32.xlu0 %v867, 32
    %v2148 = vpop.permute.xlu0 %2147
    %2149 = vrot.lane.b32.xlu0 %v869, 32
    %v2150 = vpop.permute.xlu0 %2149
    %2151 = vrot.lane.b32.xlu0 %v872, 32
    %v2152 = vpop.permute.xlu0 %2151
    %2153 = vrot.lane.b32.xlu0 %v874, 32
    %v2154 = vpop.permute.xlu0 %2153
    %2155 = vrot.lane.b32.xlu0 %v1533, 32
    %v2156 = vpop.permute.xlu0 %2155
    %2157 = vrot.lane.b32.xlu0 %v1535, 32
    %v2158 = vpop.permute.xlu0 %2157
    %2159 = vrot.lane.b32.xlu0 %v799, 32
    %v2160 = vpop.permute.xlu0 %2159
    %2161 = vrot.lane.b32.xlu0 %v882, 32
    %v2162 = vpop.permute.xlu0 %2161
    %2163 = vrot.lane.b32.xlu0 %v884, 32
    %v2164 = vpop.permute.xlu0 %2163
    %2165 = vrot.lane.b32.xlu0 %v887, 32
    %v2166 = vpop.permute.xlu0 %2165
    %2167 = vrot.lane.b32.xlu0 %v889, 32
    %v2168 = vpop.permute.xlu0 %2167
    %2169 = vrot.lane.b32.xlu0 %v892, 32
    %v2170 = vpop.permute.xlu0 %2169
    %2171 = vrot.lane.b32.xlu0 %v894, 32
    %v2172 = vpop.permute.xlu0 %2171
    %2173 = vrot.lane.b32.xlu0 %v897, 32
    %v2174 = vpop.permute.xlu0 %2173
    %2175 = vrot.lane.b32.xlu0 %v899, 32
    %v2176 = vpop.permute.xlu0 %2175
    %2177 = vrot.lane.b32.xlu0 %v902, 32
    %v2178 = vpop.permute.xlu0 %2177
    %2179 = vrot.lane.b32.xlu0 %v904, 32
    %v2180 = vpop.permute.xlu0 %2179
    %2181 = vrot.lane.b32.xlu0 %v907, 32
    %v2182 = vpop.permute.xlu0 %2181
    %2183 = vrot.lane.b32.xlu0 %v909, 32
    %v2184 = vpop.permute.xlu0 %2183
    %2185 = vrot.lane.b32.xlu0 %v912, 32
    %v2186 = vpop.permute.xlu0 %2185
    %2187 = vrot.lane.b32.xlu0 %v914, 32
    %v2188 = vpop.permute.xlu0 %2187
    %2189 = vrot.lane.b32.xlu0 %v917, 32
    %v2190 = vpop.permute.xlu0 %2189
    %2191 = vrot.lane.b32.xlu0 %v919, 32
    %v2192 = vpop.permute.xlu0 %2191
    %2193 = vrot.lane.b32.xlu0 %v922, 32
    %v2194 = vpop.permute.xlu0 %2193
    %2195 = vrot.lane.b32.xlu0 %v924, 32
    %v2196 = vpop.permute.xlu0 %2195
    %2197 = vrot.lane.b32.xlu0 %v927, 32
    %v2198 = vpop.permute.xlu0 %2197
    %2199 = vrot.lane.b32.xlu0 %v929, 32
    %v2200 = vpop.permute.xlu0 %2199
    %2201 = vrot.lane.b32.xlu0 %v932, 32
    %v2202 = vpop.permute.xlu0 %2201
    %2203 = vrot.lane.b32.xlu0 %v934, 32
    %v2204 = vpop.permute.xlu0 %2203
    %2205 = vrot.lane.b32.xlu0 %v937, 32
    %v2206 = vpop.permute.xlu0 %2205
    %2207 = vrot.lane.b32.xlu0 %v939, 32
    %v2208 = vpop.permute.xlu0 %2207
    %2209 = vrot.lane.b32.xlu0 %v942, 32
    %v2210 = vpop.permute.xlu0 %2209
    %2211 = vrot.lane.b32.xlu0 %v944, 32
    %v2212 = vpop.permute.xlu0 %2211
    %2213 = vrot.lane.b32.xlu0 %v947, 32
    %v2214 = vpop.permute.xlu0 %2213
    %2215 = vrot.lane.b32.xlu0 %v949, 32
    %v2216 = vpop.permute.xlu0 %2215
    %2217 = vrot.lane.b32.xlu0 %v1538, 32
    %v2218 = vpop.permute.xlu0 %2217
    %2219 = vrot.lane.b32.xlu0 %v1540, 32
    %v2220 = vpop.permute.xlu0 %2219
    %vm2282 = vcmask 31744
    %v2283 = vsel %vm2282, 0.0, %v615
    %v2284 = vsel %vm2282, %v336, %v617
    %v2285 = vsel %vm2282, %v148, %v619
    %v2286 = vsel %vm2282, %v337, %v621
    %v2287 = vsel %vm2282, %v151, %v623
    %v2288 = vsel %vm2282, %v338, %v625
    %v2289 = vsel %vm2282, %v154, %v627
    %v2290 = vsel %vm2282, %v339, %v629
    %v2291 = vsel %vm2282, %v157, %v631
    %v2292 = vsel %vm2282, %v340, %v633
    %v2293 = vsel %vm2282, %v160, %v635
    %v2294 = vsel %vm2282, %v341, %v637
    %v2295 = vsel %vm2282, %v163, %v639
    %v2296 = vsel %vm2282, %v342, %v641
    %v2297 = vsel %vm2282, %v166, %v643
    %v2298 = vsel %vm2282, %v343, %v645
    %v2299 = vsel %vm2282, %v169, %v647
    %v2300 = vsel %vm2282, %v344, %v649
    %v2301 = vsel %vm2282, %v172, %v651
    %v2302 = vsel %vm2282, %v345, %v653
    %v2303 = vsel %vm2282, %v175, %v655
    %v2304 = vsel %vm2282, %v346, %v657
    %v2305 = vsel %vm2282, %v178, %v659
    %v2306 = vsel %vm2282, %v347, %v661
    %v2307 = vsel %vm2282, %v181, %v663
    %v2308 = vsel %vm2282, %v348, %v665
    %v2309 = vsel %vm2282, %v184, %v667
    %v2310 = vsel %vm2282, %v349, %v669
    %v2311 = vsel %vm2282, %v187, %v671
    %v2312 = vsel %vm2282, %v350, %v673
    %v2313 = vsel %vm2282, %v190, %v675
    %v2314 = vsel %vm2282, %v352, %v677
    %v2315 = vsel %vm2282, %v196, %v679
    %v2316 = vsel %vm2282, %v353, %v681
    %v2317 = vsel %vm2282, %v199, %v683
    %v2318 = vsel %vm2282, %v354, %v685
    %v2319 = vsel %vm2282, %v202, %v687
    %v2320 = vsel %vm2282, %v355, %v689
    %v2321 = vsel %vm2282, %v205, %v691
    %v2322 = vsel %vm2282, %v356, %v693
    %v2323 = vsel %vm2282, %v208, %v695
    %v2324 = vsel %vm2282, %v357, %v697
    %v2325 = vsel %vm2282, %v211, %v699
    %v2326 = vsel %vm2282, %v358, %v701
    %v2327 = vsel %vm2282, %v214, %v703
    %v2328 = vsel %vm2282, %v359, %v705
    %v2329 = vsel %vm2282, %v217, %v707
    %v2330 = vsel %vm2282, %v360, %v709
    %v2331 = vsel %vm2282, %v220, %v711
    %v2332 = vsel %vm2282, %v361, %v713
    %v2333 = vsel %vm2282, %v223, %v715
    %v2334 = vsel %vm2282, %v362, %v717
    %v2335 = vsel %vm2282, %v226, %v719
    %v2336 = vsel %vm2282, %v363, %v721
    %v2337 = vsel %vm2282, %v229, %v723
    %v2338 = vsel %vm2282, %v364, %v725
    %v2339 = vsel %vm2282, %v232, %v727
    %v2340 = vsel %vm2282, %v365, %v729
    %v2341 = vsel %vm2282, %v235, %v731
    %v2342 = vsel %vm2282, %v366, %v733
    %v2343 = vsel %vm2282, %v238, %v735
    %vm2344 = vcmask 64512
    %v2345 = vsel %vm2344, %v2283, %v951
    %v2346 = vsel %vm2344, %v2284, %v953
    %v2347 = vsel %vm2344, %v2285, %v955
    %v2348 = vsel %vm2344, %v2286, %v957
    %v2349 = vsel %vm2344, %v2287, %v959
    %v2350 = vsel %vm2344, %v2288, %v961
    %v2351 = vsel %vm2344, %v2289, %v963
    %v2352 = vsel %vm2344, %v2290, %v965
    %v2353 = vsel %vm2344, %v2291, %v967
    %v2354 = vsel %vm2344, %v2292, %v969
    %v2355 = vsel %vm2344, %v2293, %v971
    %v2356 = vsel %vm2344, %v2294, %v973
    %v2357 = vsel %vm2344, %v2295, %v975
    %v2358 = vsel %vm2344, %v2296, %v977
    %v2359 = vsel %vm2344, %v2297, %v979
    %v2360 = vsel %vm2344, %v2298, %v981
    %v2361 = vsel %vm2344, %v2299, %v983
    %v2362 = vsel %vm2344, %v2300, %v985
    %v2363 = vsel %vm2344, %v2301, %v987
    %v2364 = vsel %vm2344, %v2302, %v989
    %v2365 = vsel %vm2344, %v2303, %v991
    %v2366 = vsel %vm2344, %v2304, %v993
    %v2367 = vsel %vm2344, %v2305, %v995
    %v2368 = vsel %vm2344, %v2306, %v997
    %v2369 = vsel %vm2344, %v2307, %v999
    %v2370 = vsel %vm2344, %v2308, %v1001
    %v2371 = vsel %vm2344, %v2309, %v1003
    %v2372 = vsel %vm2344, %v2310, %v1005
    %v2373 = vsel %vm2344, %v2311, %v1007
    %v2374 = vsel %vm2344, %v2312, %v1009
    %v2375 = vsel %vm2344, %v2313, %v1011
    %v2376 = vsel %vm2344, %v2314, %v1013
    %v2377 = vsel %vm2344, %v2315, %v1015
    %v2378 = vsel %vm2344, %v2316, %v1017
    %v2379 = vsel %vm2344, %v2317, %v1019
    %v2380 = vsel %vm2344, %v2318, %v1021
    %v2381 = vsel %vm2344, %v2319, %v1023
    %v2382 = vsel %vm2344, %v2320, %v1025
    %v2383 = vsel %vm2344, %v2321, %v1027
    %v2384 = vsel %vm2344, %v2322, %v1029
    %v2385 = vsel %vm2344, %v2323, %v1031
    %v2386 = vsel %vm2344, %v2324, %v1033
    %v2387 = vsel %vm2344, %v2325, %v1035
    %v2388 = vsel %vm2344, %v2326, %v1037
    %v2389 = vsel %vm2344, %v2327, %v1039
    %v2390 = vsel %vm2344, %v2328, %v1041
    %v2391 = vsel %vm2344, %v2329, %v1043
    %v2392 = vsel %vm2344, %v2330, %v1045
    %v2393 = vsel %vm2344, %v2331, %v1047
    %v2394 = vsel %vm2344, %v2332, %v1049
    %v2395 = vsel %vm2344, %v2333, %v1051
    %v2396 = vsel %vm2344, %v2334, %v1053
    %v2397 = vsel %vm2344, %v2335, %v1055
    %v2398 = vsel %vm2344, %v2336, %v1057
    %v2399 = vsel %vm2344, %v2337, %v1059
    %v2400 = vsel %vm2344, %v2338, %v1061
    %v2401 = vsel %vm2344, %v2339, %v1063
    %v2402 = vsel %vm2344, %v2340, %v1065
    %v2403 = vsel %vm2344, %v2341, %v1067
    %v2404 = vsel %vm2344, %v2342, %v1069
    %v2405 = vsel %vm2344, %v2343, %v1071
    %vm2406 = vcmask 97280
    %v2407 = vsel %vm2406, %v2345, %v1136
    %v2408 = vsel %vm2406, %v2345, %v1138
    %v2409 = vsel %vm2406, %v2346, %v1140
    %v2410 = vsel %vm2406, %v2347, %v1142
    %v2411 = vsel %vm2406, %v2348, %v1144
    %v2412 = vsel %vm2406, %v2349, %v1146
    %v2413 = vsel %vm2406, %v2350, %v1148
    %v2414 = vsel %vm2406, %v2351, %v1150
    %v2415 = vsel %vm2406, %v2352, %v1152
    %v2416 = vsel %vm2406, %v2353, %v1154
    %v2417 = vsel %vm2406, %v2354, %v1156
    %v2418 = vsel %vm2406, %v2355, %v1158
    %v2419 = vsel %vm2406, %v2356, %v1160
    %v2420 = vsel %vm2406, %v2357, %v1162
    %v2421 = vsel %vm2406, %v2358, %v1164
    %v2422 = vsel %vm2406, %v2359, %v1166
    %v2423 = vsel %vm2406, %v2360, %v1168
    %v2424 = vsel %vm2406, %v2361, %v1170
    %v2425 = vsel %vm2406, %v2362, %v1172
    %v2426 = vsel %vm2406, %v2363, %v1174
    %v2427 = vsel %vm2406, %v2364, %v1176
    %v2428 = vsel %vm2406, %v2365, %v1178
    %v2429 = vsel %vm2406, %v2366, %v1180
    %v2430 = vsel %vm2406, %v2367, %v1182
    %v2431 = vsel %vm2406, %v2368, %v1184
    %v2432 = vsel %vm2406, %v2369, %v1186
    %v2433 = vsel %vm2406, %v2370, %v1188
    %v2434 = vsel %vm2406, %v2371, %v1190
    %v2435 = vsel %vm2406, %v2372, %v1192
    %v2436 = vsel %vm2406, %v2373, %v1194
    %v2437 = vsel %vm2406, %v2374, %v1196
    %v2438 = vsel %vm2406, %v2375, %v1198
    %v2439 = vsel %vm2406, %v2345, %v1200
    %v2440 = vsel %vm2406, %v2345, %v1202
    %v2441 = vsel %vm2406, %v2376, %v1204
    %v2442 = vsel %vm2406, %v2377, %v1206
    %v2443 = vsel %vm2406, %v2378, %v1208
    %v2444 = vsel %vm2406, %v2379, %v1210
    %v2445 = vsel %vm2406, %v2380, %v1212
    %v2446 = vsel %vm2406, %v2381, %v1214
    %v2447 = vsel %vm2406, %v2382, %v1216
    %v2448 = vsel %vm2406, %v2383, %v1218
    %v2449 = vsel %vm2406, %v2384, %v1220
    %v2450 = vsel %vm2406, %v2385, %v1222
    %v2451 = vsel %vm2406, %v2386, %v1224
    %v2452 = vsel %vm2406, %v2387, %v1226
    %v2453 = vsel %vm2406, %v2388, %v1228
    %v2454 = vsel %vm2406, %v2389, %v1230
    %v2455 = vsel %vm2406, %v2390, %v1232
    %v2456 = vsel %vm2406, %v2391, %v1234
    %v2457 = vsel %vm2406, %v2392, %v1236
    %v2458 = vsel %vm2406, %v2393, %v1238
    %v2459 = vsel %vm2406, %v2394, %v1240
    %v2460 = vsel %vm2406, %v2395, %v1242
    %v2461 = vsel %vm2406, %v2396, %v1244
    %v2462 = vsel %vm2406, %v2397, %v1246
    %v2463 = vsel %vm2406, %v2398, %v1248
    %v2464 = vsel %vm2406, %v2399, %v1250
    %v2465 = vsel %vm2406, %v2400, %v1252
    %v2466 = vsel %vm2406, %v2401, %v1254
    %v2467 = vsel %vm2406, %v2402, %v1256
    %v2468 = vsel %vm2406, %v2403, %v1258
    %v2469 = vsel %vm2406, %v2404, %v1260
    %v2470 = vsel %vm2406, %v2405, %v1262
    %vm2471 = vcmask 130048
    %v2472 = vsel %vm2471, %v2407, %v1340
    %v2473 = vsel %vm2471, %v2408, %v1342
    %v2474 = vsel %vm2471, %v2409, %v1344
    %v2475 = vsel %vm2471, %v2410, %v1346
    %v2476 = vsel %vm2471, %v2411, %v1348
    %v2477 = vsel %vm2471, %v2412, %v1350
    %v2478 = vsel %vm2471, %v2413, %v1352
    %v2479 = vsel %vm2471, %v2414, %v1354
    %v2480 = vsel %vm2471, %v2415, %v1356
    %v2481 = vsel %vm2471, %v2416, %v1358
    %v2482 = vsel %vm2471, %v2417, %v1360
    %v2483 = vsel %vm2471, %v2418, %v1362
    %v2484 = vsel %vm2471, %v2419, %v1364
    %v2485 = vsel %vm2471, %v2420, %v1366
    %v2486 = vsel %vm2471, %v2421, %v1368
    %v2487 = vsel %vm2471, %v2422, %v1370
    %v2488 = vsel %vm2471, %v2423, %v1372
    %v2489 = vsel %vm2471, %v2424, %v1374
    %v2490 = vsel %vm2471, %v2425, %v1376
    %v2491 = vsel %vm2471, %v2426, %v1378
    %v2492 = vsel %vm2471, %v2427, %v1380
    %v2493 = vsel %vm2471, %v2428, %v1382
    %v2494 = vsel %vm2471, %v2429, %v1384
    %v2495 = vsel %vm2471, %v2430, %v1386
    %v2496 = vsel %vm2471, %v2431, %v1388
    %v2497 = vsel %vm2471, %v2432, %v1390
    %v2498 = vsel %vm2471, %v2433, %v1392
    %v2499 = vsel %vm2471, %v2434, %v1394
    %v2500 = vsel %vm2471, %v2435, %v1396
    %v2501 = vsel %vm2471, %v2436, %v1398
    %v2502 = vsel %vm2471, %v2437, %v1400
    %v2503 = vsel %vm2471, %v2438, %v1402
    %v2504 = vsel %vm2471, %v2439, %v1404
    %v2505 = vsel %vm2471, %v2440, %v1406
    %v2506 = vsel %vm2471, %v2441, %v1408
    %v2507 = vsel %vm2471, %v2442, %v1410
    %v2508 = vsel %vm2471, %v2443, %v1412
    %v2509 = vsel %vm2471, %v2444, %v1414
    %v2510 = vsel %vm2471, %v2445, %v1416
    %v2511 = vsel %vm2471, %v2446, %v1418
    %v2512 = vsel %vm2471, %v2447, %v1420
    %v2513 = vsel %vm2471, %v2448, %v1422
    %v2514 = vsel %vm2471, %v2449, %v1424
    %v2515 = vsel %vm2471, %v2450, %v1426
    %v2516 = vsel %vm2471, %v2451, %v1428
    %v2517 = vsel %vm2471, %v2452, %v1430
    %v2518 = vsel %vm2471, %v2453, %v1432
    %v2519 = vsel %vm2471, %v2454, %v1434
    %v2520 = vsel %vm2471, %v2455, %v1436
    %v2521 = vsel %vm2471, %v2456, %v1438
    %v2522 = vsel %vm2471, %v2457, %v1440
    %v2523 = vsel %vm2471, %v2458, %v1442
    %v2524 = vsel %vm2471, %v2459, %v1444
    %v2525 = vsel %vm2471, %v2460, %v1446
    %v2526 = vsel %vm2471, %v2461, %v1448
    %v2527 = vsel %vm2471, %v2462, %v1450
    %v2528 = vsel %vm2471, %v2463, %v1452
    %v2529 = vsel %vm2471, %v2464, %v1454
    %v2530 = vsel %vm2471, %v2465, %v1456
    %v2531 = vsel %vm2471, %v2466, %v1458
    %v2532 = vsel %vm2471, %v2467, %v1460
    %v2533 = vsel %vm2471, %v2468, %v1462
    %v2534 = vsel %vm2471, %v2469, %v1464
    %v2535 = vsel %vm2471, %v2470, %v1466
    %vm2536 = vcmask 162816
    %v2537 = vsel %vm2536, %v2472, %v1542
    %v2538 = vsel %vm2536, %v2473, %v1544
    %v2539 = vsel %vm2536, %v2474, %v1546
    %v2540 = vsel %vm2536, %v2475, %v1548
    %v2541 = vsel %vm2536, %v2476, %v1550
    %v2542 = vsel %vm2536, %v2477, %v1552
    %v2543 = vsel %vm2536, %v2478, %v1554
    %v2544 = vsel %vm2536, %v2479, %v1556
    %v2545 = vsel %vm2536, %v2480, %v1558
    %v2546 = vsel %vm2536, %v2481, %v1560
    %v2547 = vsel %vm2536, %v2482, %v1562
    %v2548 = vsel %vm2536, %v2483, %v1564
    %v2549 = vsel %vm2536, %v2484, %v1566
    %v2550 = vsel %vm2536, %v2485, %v1568
    %v2551 = vsel %vm2536, %v2486, %v1570
    %v2552 = vsel %vm2536, %v2487, %v1572
    %v2553 = vsel %vm2536, %v2488, %v1574
    %v2554 = vsel %vm2536, %v2489, %v1576
    %v2555 = vsel %vm2536, %v2490, %v1578
    %v2556 = vsel %vm2536, %v2491, %v1580
    %v2557 = vsel %vm2536, %v2492, %v1582
    %v2558 = vsel %vm2536, %v2493, %v1584
    %v2559 = vsel %vm2536, %v2494, %v1586
    %v2560 = vsel %vm2536, %v2495, %v1588
    %v2561 = vsel %vm2536, %v2496, %v1590
    %v2562 = vsel %vm2536, %v2497, %v1592
    %v2563 = vsel %vm2536, %v2498, %v1594
    %v2564 = vsel %vm2536, %v2499, %v1596
    %v2565 = vsel %vm2536, %v2500, %v1598
    %v2566 = vsel %vm2536, %v2501, %v1600
    %v2567 = vsel %vm2536, %v2502, %v1602
    %v2568 = vsel %vm2536, %v2503, %v1604
    %v2569 = vsel %vm2536, %v2504, %v1606
    %v2570 = vsel %vm2536, %v2505, %v1608
    %v2571 = vsel %vm2536, %v2506, %v1610
    %v2572 = vsel %vm2536, %v2507, %v1612
    %v2573 = vsel %vm2536, %v2508, %v1614
    %v2574 = vsel %vm2536, %v2509, %v1616
    %v2575 = vsel %vm2536, %v2510, %v1618
    %v2576 = vsel %vm2536, %v2511, %v1620
    %v2577 = vsel %vm2536, %v2512, %v1622
    %v2578 = vsel %vm2536, %v2513, %v1624
    %v2579 = vsel %vm2536, %v2514, %v1626
    %v2580 = vsel %vm2536, %v2515, %v1628
    %v2581 = vsel %vm2536, %v2516, %v1630
    %v2582 = vsel %vm2536, %v2517, %v1632
    %v2583 = vsel %vm2536, %v2518, %v1634
    %v2584 = vsel %vm2536, %v2519, %v1636
    %v2585 = vsel %vm2536, %v2520, %v1638
    %v2586 = vsel %vm2536, %v2521, %v1640
    %v2587 = vsel %vm2536, %v2522, %v1642
    %v2588 = vsel %vm2536, %v2523, %v1644
    %v2589 = vsel %vm2536, %v2524, %v1646
    %v2590 = vsel %vm2536, %v2525, %v1648
    %v2591 = vsel %vm2536, %v2526, %v1650
    %v2592 = vsel %vm2536, %v2527, %v1652
    %v2593 = vsel %vm2536, %v2528, %v1654
    %v2594 = vsel %vm2536, %v2529, %v1656
    %v2595 = vsel %vm2536, %v2530, %v1658
    %v2596 = vsel %vm2536, %v2531, %v1660
    %v2597 = vsel %vm2536, %v2532, %v1662
    %v2598 = vsel %vm2536, %v2533, %v1664
    %v2599 = vsel %vm2536, %v2534, %v1666
    %v2600 = vsel %vm2536, %v2535, %v1668
    %vm2601 = vcmask 195584
    %v2602 = vsel %vm2601, %v2537, %v1734
    %v2603 = vsel %vm2601, %v2538, %v1736
    %v2604 = vsel %vm2601, %v2539, %v1738
    %v2605 = vsel %vm2601, %v2540, %v1740
    %v2606 = vsel %vm2601, %v2541, %v1742
    %v2607 = vsel %vm2601, %v2542, %v1744
    %v2608 = vsel %vm2601, %v2543, %v1746
    %v2609 = vsel %vm2601, %v2544, %v1748
    %v2610 = vsel %vm2601, %v2545, %v1750
    %v2611 = vsel %vm2601, %v2546, %v1752
    %v2612 = vsel %vm2601, %v2547, %v1754
    %v2613 = vsel %vm2601, %v2548, %v1756
    %v2614 = vsel %vm2601, %v2549, %v1758
    %v2615 = vsel %vm2601, %v2550, %v1760
    %v2616 = vsel %vm2601, %v2551, %v1762
    %v2617 = vsel %vm2601, %v2552, %v1764
    %v2618 = vsel %vm2601, %v2553, %v1766
    %v2619 = vsel %vm2601, %v2554, %v1768
    %v2620 = vsel %vm2601, %v2555, %v1770
    %v2621 = vsel %vm2601, %v2556, %v1772
    %v2622 = vsel %vm2601, %v2557, %v1774
    %v2623 = vsel %vm2601, %v2558, %v1776
    %v2624 = vsel %vm2601, %v2559, %v1778
    %v2625 = vsel %vm2601, %v2560, %v1780
    %v2626 = vsel %vm2601, %v2561, %v1782
    %v2627 = vsel %vm2601, %v2562, %v1784
    %v2628 = vsel %vm2601, %v2563, %v1786
    %v2629 = vsel %vm2601, %v2564, %v1788
    %v2630 = vsel %vm2601, %v2565, %v1790
    %v2631 = vsel %vm2601, %v2566, %v1792
    %v2632 = vsel %vm2601, %v2567, %v1794
    %v2633 = vsel %vm2601, %v2568, %v1794
    %v2634 = vsel %vm2601, %v2569, %v1796
    %v2635 = vsel %vm2601, %v2570, %v1798
    %v2636 = vsel %vm2601, %v2571, %v1800
    %v2637 = vsel %vm2601, %v2572, %v1802
    %v2638 = vsel %vm2601, %v2573, %v1804
    %v2639 = vsel %vm2601, %v2574, %v1806
    %v2640 = vsel %vm2601, %v2575, %v1808
    %v2641 = vsel %vm2601, %v2576, %v1810
    %v2642 = vsel %vm2601, %v2577, %v1812
    %v2643 = vsel %vm2601, %v2578, %v1814
    %v2644 = vsel %vm2601, %v2579, %v1816
    %v2645 = vsel %vm2601, %v2580, %v1818
    %v2646 = vsel %vm2601, %v2581, %v1820
    %v2647 = vsel %vm2601, %v2582, %v1822
    %v2648 = vsel %vm2601, %v2583, %v1824
    %v2649 = vsel %vm2601, %v2584, %v1826
    %v2650 = vsel %vm2601, %v2585, %v1828
    %v2651 = vsel %vm2601, %v2586, %v1830
    %v2652 = vsel %vm2601, %v2587, %v1832
    %v2653 = vsel %vm2601, %v2588, %v1834
    %v2654 = vsel %vm2601, %v2589, %v1836
    %v2655 = vsel %vm2601, %v2590, %v1838
    %v2656 = vsel %vm2601, %v2591, %v1840
    %v2657 = vsel %vm2601, %v2592, %v1842
    %v2658 = vsel %vm2601, %v2593, %v1844
    %v2659 = vsel %vm2601, %v2594, %v1846
    %v2660 = vsel %vm2601, %v2595, %v1848
    %v2661 = vsel %vm2601, %v2596, %v1850
    %v2662 = vsel %vm2601, %v2597, %v1852
    %v2663 = vsel %vm2601, %v2598, %v1854
    %v2664 = vsel %vm2601, %v2599, %v1794
    %v2665 = vsel %vm2601, %v2600, %v1794
    %vm2666 = vcmask 228352
    %v2667 = vsel %vm2666, %v2602, %v1917
    %v2668 = vsel %vm2666, %v2603, %v1919
    %v2669 = vsel %vm2666, %v2604, %v1921
    %v2670 = vsel %vm2666, %v2605, %v1923
    %v2671 = vsel %vm2666, %v2606, %v1925
    %v2672 = vsel %vm2666, %v2607, %v1927
    %v2673 = vsel %vm2666, %v2608, %v1929
    %v2674 = vsel %vm2666, %v2609, %v1931
    %v2675 = vsel %vm2666, %v2610, %v1933
    %v2676 = vsel %vm2666, %v2611, %v1935
    %v2677 = vsel %vm2666, %v2612, %v1937
    %v2678 = vsel %vm2666, %v2613, %v1939
    %v2679 = vsel %vm2666, %v2614, %v1941
    %v2680 = vsel %vm2666, %v2615, %v1943
    %v2681 = vsel %vm2666, %v2616, %v1945
    %v2682 = vsel %vm2666, %v2617, %v1947
    %v2683 = vsel %vm2666, %v2618, %v1949
    %v2684 = vsel %vm2666, %v2619, %v1951
    %v2685 = vsel %vm2666, %v2620, %v1953
    %v2686 = vsel %vm2666, %v2621, %v1955
    %v2687 = vsel %vm2666, %v2622, %v1957
    %v2688 = vsel %vm2666, %v2623, %v1959
    %v2689 = vsel %vm2666, %v2624, %v1961
    %v2690 = vsel %vm2666, %v2625, %v1963
    %v2691 = vsel %vm2666, %v2626, %v1965
    %v2692 = vsel %vm2666, %v2627, %v1967
    %v2693 = vsel %vm2666, %v2628, %v1969
    %v2694 = vsel %vm2666, %v2629, %v1971
    %v2695 = vsel %vm2666, %v2630, %v1973
    %v2696 = vsel %vm2666, %v2631, %v1975
    %v2697 = vsel %vm2666, %v2632, %v1977
    %v2698 = vsel %vm2666, %v2633, %v1977
    %v2699 = vsel %vm2666, %v2634, %v1979
    %v2700 = vsel %vm2666, %v2635, %v1981
    %v2701 = vsel %vm2666, %v2636, %v1983
    %v2702 = vsel %vm2666, %v2637, %v1985
    %v2703 = vsel %vm2666, %v2638, %v1987
    %v2704 = vsel %vm2666, %v2639, %v1989
    %v2705 = vsel %vm2666, %v2640, %v1991
    %v2706 = vsel %vm2666, %v2641, %v1993
    %v2707 = vsel %vm2666, %v2642, %v1995
    %v2708 = vsel %vm2666, %v2643, %v1997
    %v2709 = vsel %vm2666, %v2644, %v1999
    %v2710 = vsel %vm2666, %v2645, %v2001
    %v2711 = vsel %vm2666, %v2646, %v2003
    %v2712 = vsel %vm2666, %v2647, %v2005
    %v2713 = vsel %vm2666, %v2648, %v2007
    %v2714 = vsel %vm2666, %v2649, %v2009
    %v2715 = vsel %vm2666, %v2650, %v2011
    %v2716 = vsel %vm2666, %v2651, %v2013
    %v2717 = vsel %vm2666, %v2652, %v2015
    %v2718 = vsel %vm2666, %v2653, %v2017
    %v2719 = vsel %vm2666, %v2654, %v2019
    %v2720 = vsel %vm2666, %v2655, %v2021
    %v2721 = vsel %vm2666, %v2656, %v2023
    %v2722 = vsel %vm2666, %v2657, %v2025
    %v2723 = vsel %vm2666, %v2658, %v2027
    %v2724 = vsel %vm2666, %v2659, %v2029
    %v2725 = vsel %vm2666, %v2660, %v2031
    %v2726 = vsel %vm2666, %v2661, %v2033
    %v2727 = vsel %vm2666, %v2662, %v2035
    %v2728 = vsel %vm2666, %v2663, %v2037
    %v2729 = vsel %vm2666, %v2664, %v1977
    %v2730 = vsel %vm2666, %v2665, %v1977
    %vm2731 = vcmask 261120
    %v2732 = vsel %vm2731, %v2667, %v2100
    %v2733 = vsel %vm2731, %v2668, %v2102
    %v2734 = vsel %vm2731, %v2669, %v2104
    %v2735 = vsel %vm2731, %v2670, %v2106
    %v2736 = vsel %vm2731, %v2671, %v2108
    %v2737 = vsel %vm2731, %v2672, %v2110
    %v2738 = vsel %vm2731, %v2673, %v2112
    %v2739 = vsel %vm2731, %v2674, %v2114
    %v2740 = vsel %vm2731, %v2675, %v2116
    %v2741 = vsel %vm2731, %v2676, %v2118
    %v2742 = vsel %vm2731, %v2677, %v2120
    %v2743 = vsel %vm2731, %v2678, %v2122
    %v2744 = vsel %vm2731, %v2679, %v2124
    %v2745 = vsel %vm2731, %v2680, %v2126
    %v2746 = vsel %vm2731, %v2681, %v2128
    %v2747 = vsel %vm2731, %v2682, %v2130
    %v2748 = vsel %vm2731, %v2683, %v2132
    %v2749 = vsel %vm2731, %v2684, %v2134
    %v2750 = vsel %vm2731, %v2685, %v2136
    %v2751 = vsel %vm2731, %v2686, %v2138
    %v2752 = vsel %vm2731, %v2687, %v2140
    %v2753 = vsel %vm2731, %v2688, %v2142
    %v2754 = vsel %vm2731, %v2689, %v2144
    %v2755 = vsel %vm2731, %v2690, %v2146
    %v2756 = vsel %vm2731, %v2691, %v2148
    %v2757 = vsel %vm2731, %v2692, %v2150
    %v2758 = vsel %vm2731, %v2693, %v2152
    %v2759 = vsel %vm2731, %v2694, %v2154
    %v2760 = vsel %vm2731, %v2695, %v2156
    %v2761 = vsel %vm2731, %v2696, %v2158
    %v2762 = vsel %vm2731, %v2697, %v2160
    %v2763 = vsel %vm2731, %v2698, %v2160
    %v2764 = vsel %vm2731, %v2699, %v2162
    %v2765 = vsel %vm2731, %v2700, %v2164
    %v2766 = vsel %vm2731, %v2701, %v2166
    %v2767 = vsel %vm2731, %v2702, %v2168
    %v2768 = vsel %vm2731, %v2703, %v2170
    %v2769 = vsel %vm2731, %v2704, %v2172
    %v2770 = vsel %vm2731, %v2705, %v2174
    %v2771 = vsel %vm2731, %v2706, %v2176
    %v2772 = vsel %vm2731, %v2707, %v2178
    %v2773 = vsel %vm2731, %v2708, %v2180
    %v2774 = vsel %vm2731, %v2709, %v2182
    %v2775 = vsel %vm2731, %v2710, %v2184
    %v2776 = vsel %vm2731, %v2711, %v2186
    %v2777 = vsel %vm2731, %v2712, %v2188
    %v2778 = vsel %vm2731, %v2713, %v2190
    %v2779 = vsel %vm2731, %v2714, %v2192
    %v2780 = vsel %vm2731, %v2715, %v2194
    %v2781 = vsel %vm2731, %v2716, %v2196
    %v2782 = vsel %vm2731, %v2717, %v2198
    %v2783 = vsel %vm2731, %v2718, %v2200
    %v2784 = vsel %vm2731, %v2719, %v2202
    %v2785 = vsel %vm2731, %v2720, %v2204
    %v2786 = vsel %vm2731, %v2721, %v2206
    %v2787 = vsel %vm2731, %v2722, %v2208
    %v2788 = vsel %vm2731, %v2723, %v2210
    %v2789 = vsel %vm2731, %v2724, %v2212
    %v2790 = vsel %vm2731, %v2725, %v2214
    %v2791 = vsel %vm2731, %v2726, %v2216
    %v2792 = vsel %vm2731, %v2727, %v2218
    %v2793 = vsel %vm2731, %v2728, %v2220
    %v2794 = vsel %vm2731, %v2729, %v2160
    %v2795 = vsel %vm2731, %v2730, %v2160
    %2797 = vset.pattern.permute.xlu0 0
    %2798 = vperm.xlu0 %2797, %v80
    %v2799 = vpop.permute.xlu0 %2798
    %vm2801 = vcmask 293888
    %v2803 = vsel %vm2801, %v79, 0
    %v2806 = vsel %vm2801, %v2732, 0
    %v2809 = vsel %vm2801, %v2733, 0
    %v2812 = vsel %vm2801, %v2734, 0
    %v2815 = vsel %vm2801, %v2735, 0
    %v2818 = vsel %vm2801, %v2736, 0
    %v2821 = vsel %vm2801, %v2737, 0
    %v2824 = vsel %vm2801, %v2738, 0
    %v2827 = vsel %vm2801, %v2739, 0
    %v2830 = vsel %vm2801, %v2740, 0
    %v2833 = vsel %vm2801, %v2741, 0
    %v2836 = vsel %vm2801, %v2742, 0
    %v2839 = vsel %vm2801, %v2743, 0
    %v2842 = vsel %vm2801, %v2744, 0
    %v2845 = vsel %vm2801, %v2745, 0
    %v2848 = vsel %vm2801, %v2746, 0
    %v2851 = vsel %vm2801, %v2747, 0
    %v2854 = vsel %vm2801, %v2748, 0
    %v2857 = vsel %vm2801, %v2749, 0
    %v2860 = vsel %vm2801, %v2750, 0
    %v2863 = vsel %vm2801, %v2751, 0
    %v2866 = vsel %vm2801, %v2752, 0
    %v2869 = vsel %vm2801, %v2753, 0
    %v2872 = vsel %vm2801, %v2754, 0
    %v2875 = vsel %vm2801, %v2755, 0
    %v2878 = vsel %vm2801, %v2756, 0
    %v2881 = vsel %vm2801, %v2757, 0
    %v2884 = vsel %vm2801, %v2758, 0
    %v2887 = vsel %vm2801, %v2759, 0
    %v2890 = vsel %vm2801, %v2760, 0
    %v2893 = vsel %vm2801, %v2761, 0
    %v2896 = vsel %vm2801, %v2762, 0
    %v2899 = vsel %vm2801, %v2763, 0
    %v2902 = vsel %vm2801, %v2764, 0
    %v2905 = vsel %vm2801, %v2765, 0
    %v2908 = vsel %vm2801, %v2766, 0
    %v2911 = vsel %vm2801, %v2767, 0
    %v2914 = vsel %vm2801, %v2768, 0
    %v2917 = vsel %vm2801, %v2769, 0
    %v2920 = vsel %vm2801, %v2770, 0
    %v2923 = vsel %vm2801, %v2771, 0
    %v2926 = vsel %vm2801, %v2772, 0
    %v2929 = vsel %vm2801, %v2773, 0
    %v2932 = vsel %vm2801, %v2774, 0
    %v2935 = vsel %vm2801, %v2775, 0
    %v2938 = vsel %vm2801, %v2776, 0
    %v2941 = vsel %vm2801, %v2777, 0
    %v2944 = vsel %vm2801, %v2778, 0
    %v2947 = vsel %vm2801, %v2779, 0
    %v2950 = vsel %vm2801, %v2780, 0
    %v2953 = vsel %vm2801, %v2781, 0
    %v2956 = vsel %vm2801, %v2782, 0
    %v2959 = vsel %vm2801, %v2783, 0
    %v2962 = vsel %vm2801, %v2784, 0
    %v2965 = vsel %vm2801, %v2785, 0
    %v2968 = vsel %vm2801, %v2786, 0
    %v2971 = vsel %vm2801, %v2787, 0
    %v2974 = vsel %vm2801, %v2788, 0
    %v2977 = vsel %vm2801, %v2789, 0
    %v2980 = vsel %vm2801, %v2790, 0
    %v2983 = vsel %vm2801, %v2791, 0
    %v2986 = vsel %vm2801, %v2792, 0
    %v2989 = vsel %vm2801, %v2793, 0
    %v2992 = vsel %vm2801, %v2794, 0
    %v2995 = vsel %vm2801, %v2795, 0
    %2997 = vmatprep.subr.mxu0 0.0
    %2998 = vmatpush1.xpose.msra.mxu0 %v2806
    %2999 = vmatprep.subr.mxu0 0.0
    %3000 = vmatpush1.xpose.msra.mxu0 %v2809
    %3001 = vmatprep.subr.mxu0 0.0
    %3002 = vmatpush1.xpose.msra.mxu0 %v2812
    %3003 = vmatprep.subr.mxu0 0.0
    %3004 = vmatpush1.xpose.msra.mxu0 %v2815
    %3005 = vmatprep.subr.mxu0 0.0
    %3006 = vmatpush1.xpose.msra.mxu0 %v2818
    %3007 = vmatprep.subr.mxu0 0.0
    %3008 = vmatpush1.xpose.msra.mxu0 %v2821
    %3009 = vmatprep.subr.mxu0 0.0
    %3010 = vmatpush1.xpose.msra.mxu0 %v2824
    %3011 = vmatprep.subr.mxu0 0.0
    %3012 = vmatpush1.xpose.msra.mxu0 %v2827
    %3013 = vmatprep.subr.mxu0 0.0
    %3014 = vmatpush1.xpose.msra.mxu0 %v2830
    %3015 = vmatprep.subr.mxu0 0.0
    %3016 = vmatpush1.xpose.msra.mxu0 %v2833
    %3017 = vmatprep.subr.mxu0 0.0
    %3018 = vmatpush1.xpose.msra.mxu0 %v2836
    %3019 = vmatprep.subr.mxu0 0.0
    %3020 = vmatpush1.xpose.msra.mxu0 %v2839
    %3021 = vmatprep.subr.mxu0 0.0
    %3022 = vmatpush1.xpose.msra.mxu0 %v2842
    %3023 = vmatprep.subr.mxu0 0.0
    %3024 = vmatpush1.xpose.msra.mxu0 %v2845
    %3025 = vmatprep.subr.mxu0 0.0
    %3026 = vmatpush1.xpose.msra.mxu0 %v2848
    %3027 = vmatprep.subr.mxu0 0.0
    %3028 = vmatpush1.xpose.msra.mxu0 %v2851
    %3029 = vmatprep.subr.mxu0 0.0
    %3030 = vmatpush1.xpose.msra.mxu0 %v2854
    %3031 = vmatprep.subr.mxu0 0.0
    %3032 = vmatpush1.xpose.msra.mxu0 %v2857
    %3033 = vmatprep.subr.mxu0 0.0
    %3034 = vmatpush1.xpose.msra.mxu0 %v2860
    %3035 = vmatprep.subr.mxu0 0.0
    %3036 = vmatpush1.xpose.msra.mxu0 %v2863
    %3037 = vmatprep.subr.mxu0 0.0
    %3038 = vmatpush1.xpose.msra.mxu0 %v2866
    %3039 = vmatprep.subr.mxu0 0.0
    %3040 = vmatpush1.xpose.msra.mxu0 %v2869
    %3041 = vmatprep.subr.mxu0 0.0
    %3042 = vmatpush1.xpose.msra.mxu0 %v2872
    %3043 = vmatprep.subr.mxu0 0.0
    %3044 = vmatpush1.xpose.msra.mxu0 %v2875
    %3045 = vmatprep.subr.mxu0 0.0
    %3046 = vmatpush1.xpose.msra.mxu0 %v2878
    %3047 = vmatprep.subr.mxu0 0.0
    %3048 = vmatpush1.xpose.msra.mxu0 %v2881
    %3049 = vmatprep.subr.mxu0 0.0
    %3050 = vmatpush1.xpose.msra.mxu0 %v2884
    %3051 = vmatprep.subr.mxu0 0.0
    %3052 = vmatpush1.xpose.msra.mxu0 %v2887
    %3053 = vmatprep.subr.mxu0 0.0
    %3054 = vmatpush1.xpose.msra.mxu0 %v2890
    %3055 = vmatprep.subr.mxu0 0.0
    %3056 = vmatpush1.xpose.msra.mxu0 %v2893
    %3057 = vmatprep.subr.mxu0 0.0
    %3058 = vmatpush1.xpose.msra.mxu0 %v2896
    %3059 = vmatprep.subr.mxu0 0.0
    %3060 = vmatpush1.xpose.msra.mxu0 %v2899
    %3061 = vmatprep.mubr.f32.mxu0 0.0
    %3062 = vmatmul.mubr.f32.gmra.mrb[0].mxu0 %v2803
    %v3063 = vpop.f32.mrb[0].mxu0
    %v3064 = vadd.f32 %v2799, %v3063
    %v3065 = vpop.f32.mrb[0].mxu0
    %v3066 = vadd.f32 %v2799, %v3065
    %3067 = vdwg.mxu0
    %3068 = vmatprep.subr.mxu0 0.0
    %3069 = vmatpush1.xpose.msra.mxu0 %v2902
    %3070 = vmatprep.subr.mxu0 0.0
    %3071 = vmatpush1.xpose.msra.mxu0 %v2905
    %3072 = vmatprep.subr.mxu0 0.0
    %3073 = vmatpush1.xpose.msra.mxu0 %v2908
    %3074 = vmatprep.subr.mxu0 0.0
    %3075 = vmatpush1.xpose.msra.mxu0 %v2911
    %3076 = vmatprep.subr.mxu0 0.0
    %3077 = vmatpush1.xpose.msra.mxu0 %v2914
    %3078 = vmatprep.subr.mxu0 0.0
    %3079 = vmatpush1.xpose.msra.mxu0 %v2917
    %3080 = vmatprep.subr.mxu0 0.0
    %3081 = vmatpush1.xpose.msra.mxu0 %v2920
    %3082 = vmatprep.subr.mxu0 0.0
    %3083 = vmatpush1.xpose.msra.mxu0 %v2923
    %3084 = vmatprep.subr.mxu0 0.0
    %3085 = vmatpush1.xpose.msra.mxu0 %v2926
    %3086 = vmatprep.subr.mxu0 0.0
    %3087 = vmatpush1.xpose.msra.mxu0 %v2929
    %3088 = vmatprep.subr.mxu0 0.0
    %3089 = vmatpush1.xpose.msra.mxu0 %v2932
    %3090 = vmatprep.subr.mxu0 0.0
    %3091 = vmatpush1.xpose.msra.mxu0 %v2935
    %3092 = vmatprep.subr.mxu0 0.0
    %3093 = vmatpush1.xpose.msra.mxu0 %v2938
    %3094 = vmatprep.subr.mxu0 0.0
    %3095 = vmatpush1.xpose.msra.mxu0 %v2941
    %3096 = vmatprep.subr.mxu0 0.0
    %3097 = vmatpush1.xpose.msra.mxu0 %v2944
    %3098 = vmatprep.subr.mxu0 0.0
    %3099 = vmatpush1.xpose.msra.mxu0 %v2947
    %3100 = vmatprep.subr.mxu0 0.0
    %3101 = vmatpush1.xpose.msra.mxu0 %v2950
    %3102 = vmatprep.subr.mxu0 0.0
    %3103 = vmatpush1.xpose.msra.mxu0 %v2953
    %3104 = vmatprep.subr.mxu0 0.0
    %3105 = vmatpush1.xpose.msra.mxu0 %v2956
    %3106 = vmatprep.subr.mxu0 0.0
    %3107 = vmatpush1.xpose.msra.mxu0 %v2959
    %3108 = vmatprep.subr.mxu0 0.0
    %3109 = vmatpush1.xpose.msra.mxu0 %v2962
    %3110 = vmatprep.subr.mxu0 0.0
    %3111 = vmatpush1.xpose.msra.mxu0 %v2965
    %3112 = vmatprep.subr.mxu0 0.0
    %3113 = vmatpush1.xpose.msra.mxu0 %v2968
    %3114 = vmatprep.subr.mxu0 0.0
    %3115 = vmatpush1.xpose.msra.mxu0 %v2971
    %3116 = vmatprep.subr.mxu0 0.0
    %3117 = vmatpush1.xpose.msra.mxu0 %v2974
    %3118 = vmatprep.subr.mxu0 0.0
    %3119 = vmatpush1.xpose.msra.mxu0 %v2977
    %3120 = vmatprep.subr.mxu0 0.0
    %3121 = vmatpush1.xpose.msra.mxu0 %v2980
    %3122 = vmatprep.subr.mxu0 0.0
    %3123 = vmatpush1.xpose.msra.mxu0 %v2983
    %3124 = vmatprep.subr.mxu0 0.0
    %3125 = vmatpush1.xpose.msra.mxu0 %v2986
    %3126 = vmatprep.subr.mxu0 0.0
    %3127 = vmatpush1.xpose.msra.mxu0 %v2989
    %3128 = vmatprep.subr.mxu0 0.0
    %3129 = vmatpush1.xpose.msra.mxu0 %v2992
    %3130 = vmatprep.subr.mxu0 0.0
    %3131 = vmatpush1.xpose.msra.mxu0 %v2995
    %3132 = vmatprep.mubr.f32.mxu0 0.0
    %3133 = vmatmul.mubr.f32.gmra.mrb[0].mxu0 %v2803
    %v3134 = vpop.f32.mrb[0].mxu0
    %v3135 = vadd.f32 %v2799, %v3134
    %v3136 = vpop.f32.mrb[0].mxu0
    %v3137 = vadd.f32 %v2799, %v3136
    %3138 = vdwg.mxu0
    %v3139 = vadd.f32 %v3064, %v3066
    %v3140 = vadd.f32 %v3139, %v3135
    %v3141 = vadd.f32 %v3140, %v3137
    %3142 = vadd.xlane.f32.xlu0 %v3141
    %v3143 = vpop.xlane.xlu0 %3142
    %v3144 = vmul.f32 %v3064, %v3064
    %v3145 = vmul.f32 %v3066, %v3066
    %v3146 = vmul.f32 %v3135, %v3135
    %v3147 = vmul.f32 %v3137, %v3137
    %v3148 = vadd.f32 %v3144, %v3145
    %v3149 = vadd.f32 %v3148, %v3146
    %v3150 = vadd.f32 %v3149, %v3147
    %3151 = vadd.xlane.f32.xlu0 %v3150
    %v3152 = vpop.xlane.xlu0 %3151
    %v3153 = vmul.f32 %v3143, 0.001953125
    %v3154 = vmul.f32 %v3152, 0.001953125
    %v3155 = vmul.f32 %v3153, %v3153
    %v3156 = vsub.f32 %v3154, %v3155
    %v3157 = vsub.f32 %v3064, %v3153
    %v3158 = vsub.f32 %v3066, %v3153
    %v3159 = vsub.f32 %v3135, %v3153
    %v3160 = vsub.f32 %v3137, %v3153
    %v3161 = vadd.f32 %v3156, 1e-05
    %v3162 = vrsqrt.pop %v3161
    %v3163 = vmul.f32 %v3157, %v3162
    %v3164 = vmul.f32 %v3158, %v3162
    %v3165 = vmul.f32 %v3159, %v3162
    %v3166 = vmul.f32 %v3160, %v3162
    %v3167 = vmax.f32 %v3163, 0.0
    %v3168 = vmax.f32 %v3164, 0.0
    %v3169 = vmax.f32 %v3165, 0.0
    %v3170 = vmax.f32 %v3166, 0.0
    %3171 = vst [vmem:[#allocation2] sm:$0xff] %v3167
    %3172 = vst [vmem:[#allocation2 + $0x8] sm:$0xff] %v3168
    %3173 = vst [vmem:[#allocation2 + $0x10] sm:$0xff] %v3169
    %3174 = vst [vmem:[#allocation2 + $0x18] sm:$0xff] %v3170
    // Predicated region
    $region14: #{tpu_custom_call.1} parent=1 // pred_check
      _
    $region15: #{tpu_custom_call.1} parent=1 // pred_check_branch
      %3176 = sbr.rel (0) target = $region17
    $region16: #{tpu_custom_call.1} parent=1 // pred_region
      %s3178 = ssub.s32 512, 512
      %3179 = vsyncadd [#allocation3], %s3178
      %s3181 = sshll.u32 [#allocation2], 4
      %s3182 = int_to_ptr.vmem [resolvable:$true] %s3181
      %3184 = dma.vmem_to_hbm [thread:$0]  %s3182, 512, %s3, [#allocation3]
    $region17: #{tpu_custom_call.1} parent=1 // pred_fallthru
      _
    // Predicated region
    $region18: #{tpu_custom_call.1} parent=1 // pred_check
      _
    $region19: #{tpu_custom_call.1} parent=1 // pred_check_branch
      %3186 = sbr.rel (0) target = $region21
    $region20: #{tpu_custom_call.1} parent=1 // pred_region
      %3187 = dma.done [#allocation3], 512
    $region21: #{tpu_custom_call.1} parent=1 // pred_fallthru
      _
    %3188 = vsyncpa [#allocation3], 1

</llo_original>
